<compile_context>
chip_gen: v7x
topology: tpu7x:2x2x1
jax: 0.10.0
libtpu: 0.0.40
codegen_flags: <defaults>
</compile_context>

<pallas_src>
import functools

import jax
import jax.numpy as jnp
from jax import lax
from jax.experimental import pallas as pl
from jax.experimental.pallas import tpu as pltpu


def _round_up(v, m):
    return ((v + m - 1) // m) * m


def _pick_nb(n):
    """Batch rows per grid step (2 conv channels * Nb <= 8 sublanes)."""
    for nb in (4, 2, 1):
        if n % nb == 0:
            return nb
    return 1


def _pick_c_tile(C, HW, itemsize, nb, budget_bytes):
    """Largest channel tile that divides C, is a multiple of 8 (or equals C),
    and keeps one (nb, c_tile, HW) input block within budget_bytes (the
    pipeline double-buffers it => ~2x that in VMEM)."""
    if C % 8 != 0:
        # TODO(synk): for very large C not divisible by 8 this single tile can
        # exceed the scoped VMEM limit; a partial last tile would need
        # in-kernel row masking.
        return C
    max_rows = max(8, budget_bytes // max(1, nb * HW * itemsize))
    best, t = 8, 8
    while t <= C:
        if C % t == 0 and t <= max_rows:
            best = t
        t += 8
    return best


def _spatial_attn_kernel(x_ref, w_ref, b_ref, o_ref, max_sc, sum_sc, buf_ref, *,
                         ksize: int, height: int, width: int, channels: int,
                         c_tile: int, nb: int, ch_grp: int, dl: int, lb: int):
    """x_ref:  (Nb, c_tile, H*W) VMEM block of the flattened input.
    w_ref:  (K*K, 2*Nb, 1) VMEM per-tap weight columns (rows 0..Nb-1 = max
            channel weight, rows Nb..2Nb-1 = avg channel weight).
    b_ref:  (1,) SMEM bias.
    o_ref:  (1, Nb, H*W) VMEM output block.
    max_sc/sum_sc: (Nb, CH, H*W) f32 elementwise running max / sum.
    buf_ref: (2*Nb, LB) f32 zero-margined flat maps (interior at lane DL)."""
    K = ksize
    P = K // 2
    H, W = height, width
    HW = H * W
    DL, LB = dl, lb
    DR = LB - DL - HW
    base = DL - (P * W + P)          # tap (di,dj) slice start = base + di*W + dj
    CH = ch_grp
    Nb = nb

    c_idx = pl.program_id(1)
    last_c = pl.num_programs(1) - 1

    # ---- per-batch-block init: accumulators + zeroed conv margins ----------
    @pl.when(c_idx == 0)
    def _init():
        max_sc[...] = jnp.full(max_sc.shape, -jnp.inf, jnp.float32)
        sum_sc[...] = jnp.zeros(sum_sc.shape, jnp.float32)
        # Zero only the margins (vertical zero padding); the interior is fully
        # overwritten in the finalize.  Done per batch block so it is correct
        # even when the parallel axis is sharded across TensorCores.
        if DL > 0:
            buf_ref[:, pl.ds(0, DL)] = jnp.zeros((2 * Nb, DL), jnp.float32)
        if DR > 0:
            buf_ref[:, pl.ds(DL + HW, DR)] = jnp.zeros((2 * Nb, DR), jnp.float32)

    # ---- fused elementwise running max + sum over this channel tile --------
    n_full = c_tile // CH
    rem = c_tile - n_full * CH
    for b in range(Nb):                                   # static, Nb <= 4
        mm = max_sc[b]                                    # (CH, HW) f32
        ss = sum_sc[b]
        if n_full > 0:
            def body(i, carry, _b=b):
                m, s = carry
                off = pl.multiple_of(i * CH, CH)
                blk = x_ref[_b, pl.ds(off, CH), :].astype(jnp.float32)
                return jnp.maximum(m, blk), s + blk       # pure VPU, load-bound
            mm, ss = lax.fori_loop(0, n_full, body, (mm, ss),
                                   unroll=min(n_full, 8))
        if rem > 0:
            blk = x_ref[b, pl.ds(n_full * CH, rem), :].astype(jnp.float32)
            # Rare/small path: fold the remainder rows via one XLU reduce.
            mm = jnp.maximum(mm, jnp.max(blk, axis=0, keepdims=True))
            srem = jnp.sum(blk, axis=0, keepdims=True)                 # (1, HW)
            row0 = lax.broadcasted_iota(jnp.int32, (CH, 1), 0) == 0
            ss = jnp.where(row0, ss + srem, ss)           # add only into row 0
        max_sc[b] = mm
        sum_sc[b] = ss

    # ---- finalize on the last channel tile: 7x7 conv + sigmoid + store -----
    @pl.when(c_idx == last_c)
    def _finalize():
        inv_c = jnp.float32(1.0 / channels)
        # One cross-sublane reduce per map, once per batch block.
        pieces = ([jnp.max(max_sc[b], axis=0, keepdims=True) for b in range(Nb)]
                  + [jnp.sum(sum_sc[b], axis=0, keepdims=True) * inv_c
                     for b in range(Nb)])
        maps = jnp.concatenate(pieces, axis=0)            # (2*Nb, HW)
        buf_ref[:, pl.ds(DL, HW)] = maps                  # aligned dense store

        # Column index of each flat output position (horizontal zero padding).
        col = lax.broadcasted_iota(jnp.int32, (1, HW), 1) % W

        # Flat 7x7 correlation: tap (di, dj) at output q reads
        # buf[:, DL + q + (di-P)*W + (dj-P)]; one (2*Nb, HW) slice per tap,
        # both channel weights applied via the (2*Nb, 1) weight column.
        acc = jnp.zeros((2 * Nb, HW), jnp.float32)
        for dj in range(K):
            part = jnp.zeros((2 * Nb, HW), jnp.float32)
            for di in range(K):
                t = di * K + dj
                tap = buf_ref[:, pl.ds(base + di * W + dj, HW)]   # (2*Nb, HW)
                part = part + w_ref[t] * tap
            lo = P - dj
            hi = W - 1 + (P - dj)
            if lo > 0 and hi < W - 1:
                valid = (col >= lo) & (col <= hi)
            elif lo > 0:
                valid = col >= lo
            elif hi < W - 1:
                valid = col <= hi
            else:
                valid = None                               # center column: no mask
            acc = acc + (part if valid is None else jnp.where(valid, part, 0.0))

        res = acc[0:Nb] + acc[Nb:2 * Nb] + b_ref[0]        # (Nb, HW)
        o_ref[0] = jax.nn.sigmoid(res).astype(o_ref.dtype)


def spatial_attention(x, conv_w, conv_b, *, kernel_size: int = 7,
                      block_budget_bytes: int = 6 * 1024 * 1024):
    """x: (N,C,H,W).  conv_w: (1,2,K,K).  conv_b: (1,).  Returns (N,1,H,W)."""
    N, C, H, W = x.shape
    K = kernel_size
    P = K // 2
    HW = H * W
    margin = P * W + P
    DL = _round_up(max(margin, 128), 128)          # lane-aligned interior start
    LB = _round_up(DL + HW + margin, 128)

    Nb = _pick_nb(N)
    itemsize = x.dtype.itemsize
    CH = 8 * max(1, 4 // itemsize)                 # dtype-aware sublane group
    c_tile = _pick_c_tile(C, HW, itemsize, Nb, block_budget_bytes)
    num_c = max(1, C // c_tile)

    x2 = x.reshape(N, C, HW)                       # lane-dense view (free)
    w2 = conv_w.reshape(2, K * K).astype(jnp.float32)   # [channel, tap]
    w_cols = jnp.concatenate(
        [jnp.broadcast_to(w2[0][:, None, None], (K * K, Nb, 1)),
         jnp.broadcast_to(w2[1][:, None, None], (K * K, Nb, 1))],
        axis=1)                                    # (K*K, 2*Nb, 1)
    b_flat = conv_b.reshape(-1).astype(jnp.float32)

    kernel = functools.partial(
        _spatial_attn_kernel, ksize=K, height=H, width=W, channels=C,
        c_tile=c_tile, nb=Nb, ch_grp=CH, dl=DL, lb=LB)

    cost = pl.CostEstimate(
        flops=int(N * HW * (2 * C + 2 * 2 * K * K)),
        transcendentals=int(N * HW),
        bytes_accessed=int(x.size * itemsize + N * HW * itemsize),
    )

    out3 = pl.pallas_call(
        kernel,
        out_shape=jax.ShapeDtypeStruct((N // Nb, Nb, HW), x.dtype),
        grid=(N // Nb, num_c),
        in_specs=[
            pl.BlockSpec((Nb, c_tile, HW), lambda n, c: (n, c, 0)),
            pl.BlockSpec((K * K, 2 * Nb, 1), lambda n, c: (0, 0, 0)),
            pl.BlockSpec(memory_space=pltpu.MemorySpace.SMEM),
        ],
        out_specs=pl.BlockSpec((1, Nb, HW), lambda n, c: (n, 0, 0)),
        scratch_shapes=[
            pltpu.VMEM((Nb, CH, HW), jnp.float32),   # elementwise running max
            pltpu.VMEM((Nb, CH, HW), jnp.float32),   # elementwise running sum
            pltpu.VMEM((2 * Nb, LB), jnp.float32),   # zero-margined flat maps
        ],
        compiler_params=pltpu.CompilerParams(
            dimension_semantics=("parallel", "arbitrary")),
        cost_estimate=cost,
    )(x2, w_cols, b_flat)

    return out3.reshape(N, 1, H, W)


def _reference(x, conv_w, conv_b):
    max_map = jnp.max(x, axis=1, keepdims=True)
    avg_map = jnp.mean(x, axis=1, keepdims=True)
    result = jnp.concatenate([max_map, avg_map], axis=1)          # (N,2,H,W)
    out = lax.conv_general_dilated(
        result, conv_w, window_strides=(1, 1), padding="SAME",
        dimension_numbers=("NCHW", "OIHW", "NCHW"))
    out = out + conv_b.reshape(1, 1, 1, 1)
    return jax.nn.sigmoid(out)


if __name__ == "__main__":
    key = jax.random.PRNGKey(0)
    kx, kw, kb = jax.random.split(key, 3)

    N, C, H, W = 2, 4, 16, 16
    K = 7

    x = jax.random.normal(kx, (N, C, H, W), dtype=jnp.float32)
    # Deterministic synthetic Conv2d(2, 1, 7, padding=3) parameters.
    conv_w = 0.1 * jax.random.normal(kw, (1, 2, K, K), dtype=jnp.float32)
    conv_b = 0.1 * jax.random.normal(kb, (1,), dtype=jnp.float32)

    out = spatial_attention(x, conv_w, conv_b, kernel_size=K)
    out = jax.block_until_ready(out)

    ref = _reference(x, conv_w, conv_b)
    assert out.shape == (N, 1, H, W)
    err = float(jnp.max(jnp.abs(out - ref)))
    assert err < 1e-5, f"max abs err {err}"

    print("KERNEL_OK")
</pallas_src>

<mosaic_0001>
module attributes {stable_mosaic.version = 11 : i64} {
  func.func @_spatial_attn_kernel(%arg0: i32, %arg1: i32, %arg2: memref<2x4x256xf32, #tpu.memory_space<vmem>>, %arg3: memref<49x4x1xf32, #tpu.memory_space<vmem>>, %arg4: memref<1xf32, #tpu.memory_space<smem>>, %arg5: memref<1x2x256xf32, #tpu.memory_space<vmem>>, %arg6: memref<2x8x256xf32, #tpu.memory_space<vmem>>, %arg7: memref<2x8x256xf32, #tpu.memory_space<vmem>>, %arg8: memref<4x512xf32, #tpu.memory_space<vmem>>) attributes {dimension_semantics = [#tpu.dimension_semantics<parallel>, #tpu.dimension_semantics<arbitrary>], iteration_bounds = array<i64: 1, 1>, scalar_prefetch = 0 : i64, scratch_operands = 3 : i64, tpu.core_type = #tpu.core_type<tc>, window_params = [{transform_indices = @transform_0, window_bounds = array<i64: 2, 4, 256>}, {pipeline_mode = #tpu.pipeline_mode<synchronous>, transform_indices = @transform_1, window_bounds = array<i64: 49, 4, 1>}, {transform_indices = @transform_2, window_bounds = array<i64: 1>}, {transform_indices = @transform_3, window_bounds = array<i64: 1, 2, 256>}]} {
    %c0_i32 = arith.constant 0 : i32
    %0 = arith.cmpi eq, %arg1, %c0_i32 : i32
    %1 = arith.extui %0 : i1 to i32
    %c0_i32_0 = arith.constant 0 : i32
    %2 = arith.cmpi ne, %1, %c0_i32_0 : i32
    scf.if %2 {
      %cst_36 = arith.constant 0xFF800000 : f32
      %58 = vector.broadcast %cst_36 : f32 to vector<2x8x256xf32>
      %c0_37 = arith.constant 0 : index
      %c0_38 = arith.constant 0 : index
      %c0_39 = arith.constant 0 : index
      %59 = vector.load %arg6[%c0_37, %c0_38, %c0_39] : memref<2x8x256xf32, #tpu.memory_space<vmem>>, vector<2x8x256xf32>
      tpu.vector_store %arg6[%c0_37, %c0_38, %c0_39], %58 {strides = array<i32>} : memref<2x8x256xf32, #tpu.memory_space<vmem>>, vector<2x8x256xf32>,
      %cst_40 = arith.constant 0.000000e+00 : f32
      %60 = vector.broadcast %cst_40 : f32 to vector<2x8x256xf32>
      %c0_41 = arith.constant 0 : index
      %c0_42 = arith.constant 0 : index
      %c0_43 = arith.constant 0 : index
      %61 = vector.load %arg7[%c0_41, %c0_42, %c0_43] : memref<2x8x256xf32, #tpu.memory_space<vmem>>, vector<2x8x256xf32>
      tpu.vector_store %arg7[%c0_41, %c0_42, %c0_43], %60 {strides = array<i32>} : memref<2x8x256xf32, #tpu.memory_space<vmem>>, vector<2x8x256xf32>,
      %cst_44 = arith.constant 0.000000e+00 : f32
      %62 = vector.broadcast %cst_44 : f32 to vector<4x128xf32>
      %c0_45 = arith.constant 0 : index
      %c0_46 = arith.constant 0 : index
      %63 = vector.load %arg8[%c0_45, %c0_46] : memref<4x512xf32, #tpu.memory_space<vmem>>, vector<4x128xf32>
      tpu.vector_store %arg8[%c0_45, %c0_46], %62 {strides = array<i32>} : memref<4x512xf32, #tpu.memory_space<vmem>>, vector<4x128xf32>,
      %cst_47 = arith.constant 0.000000e+00 : f32
      %64 = vector.broadcast %cst_47 : f32 to vector<4x128xf32>
      %c0_48 = arith.constant 0 : index
      %c384 = arith.constant 384 : index
      %65 = vector.load %arg8[%c0_48, %c384] : memref<4x512xf32, #tpu.memory_space<vmem>>, vector<4x128xf32>
      tpu.vector_store %arg8[%c0_48, %c384], %64 {strides = array<i32>} : memref<4x512xf32, #tpu.memory_space<vmem>>, vector<4x128xf32>,
    } else {
    }
    %c0 = arith.constant 0 : index
    %c0_1 = arith.constant 0 : index
    %c0_2 = arith.constant 0 : index
    %3 = vector.load %arg6[%c0, %c0_1, %c0_2] : memref<2x8x256xf32, #tpu.memory_space<vmem>>, vector<1x8x256xf32>
    %4 = vector.shape_cast %3 : vector<1x8x256xf32> to vector<8x256xf32>
    %c0_3 = arith.constant 0 : index
    %c0_4 = arith.constant 0 : index
    %c0_5 = arith.constant 0 : index
    %5 = vector.load %arg7[%c0_3, %c0_4, %c0_5] : memref<2x8x256xf32, #tpu.memory_space<vmem>>, vector<1x8x256xf32>
    %6 = vector.shape_cast %5 : vector<1x8x256xf32> to vector<8x256xf32>
    %c0_6 = arith.constant 0 : index
    %c0_7 = arith.constant 0 : index
    %c0_8 = arith.constant 0 : index
    %7 = vector.load %arg2[%c0_6, %c0_7, %c0_8] : memref<2x4x256xf32, #tpu.memory_space<vmem>>, vector<1x4x256xf32>
    %8 = vector.shape_cast %7 : vector<1x4x256xf32> to vector<4x256xf32>
    %cst = arith.constant dense<0xFF800000> : vector<256xf32>
    %9 = vector.multi_reduction <maximumf>, %8, %cst [0] : vector<4x256xf32> to vector<256xf32>
    %10 = vector.shape_cast %9 : vector<256xf32> to vector<1x256xf32>
    %11 = vector.broadcast %10 : vector<1x256xf32> to vector<8x256xf32>
    %12 = arith.maximumf %4, %11 : vector<8x256xf32>
    %cst_9 = arith.constant dense<0.000000e+00> : vector<256xf32>
    %13 = vector.multi_reduction <add>, %8, %cst_9 [0] : vector<4x256xf32> to vector<256xf32>
    %14 = vector.shape_cast %13 : vector<256xf32> to vector<1x256xf32>
    %15 = tpu.iota {dimensions = array<i32: 0>} : vector<8x1xi32>
    %c0_i32_10 = arith.constant 0 : i32
    %16 = vector.broadcast %c0_i32_10 : i32 to vector<8x1xi32>
    %17 = arith.cmpi eq, %15, %16 : vector<8x1xi32>
    %18 = vector.broadcast %14 : vector<1x256xf32> to vector<8x256xf32>
    %19 = arith.addf %6, %18 : vector<8x256xf32>
    %20 = vector.shape_cast %17 : vector<8x1xi1> to vector<8x1xi1>
    %21 = vector.broadcast %20 : vector<8x1xi1> to vector<8x256xi1>
    %22 = arith.select %21, %19, %6 : vector<8x256xi1>, vector<8x256xf32>
    %c0_11 = arith.constant 0 : index
    %c0_12 = arith.constant 0 : index
    %c0_13 = arith.constant 0 : index
    %23 = vector.load %arg6[%c0_11, %c0_12, %c0_13] : memref<2x8x256xf32, #tpu.memory_space<vmem>>, vector<1x8x256xf32>
    %24 = vector.shape_cast %23 : vector<1x8x256xf32> to vector<8x256xf32>
    %25 = vector.shape_cast %12 : vector<8x256xf32> to vector<1x8x256xf32>
    tpu.vector_store %arg6[%c0_11, %c0_12, %c0_13], %25 {strides = array<i32>} : memref<2x8x256xf32, #tpu.memory_space<vmem>>, vector<1x8x256xf32>,
    %c0_14 = arith.constant 0 : index
    %c0_15 = arith.constant 0 : index
    %c0_16 = arith.constant 0 : index
    %26 = vector.load %arg7[%c0_14, %c0_15, %c0_16] : memref<2x8x256xf32, #tpu.memory_space<vmem>>, vector<1x8x256xf32>
    %27 = vector.shape_cast %26 : vector<1x8x256xf32> to vector<8x256xf32>
    %28 = vector.shape_cast %22 : vector<8x256xf32> to vector<1x8x256xf32>
    tpu.vector_store %arg7[%c0_14, %c0_15, %c0_16], %28 {strides = array<i32>} : memref<2x8x256xf32, #tpu.memory_space<vmem>>, vector<1x8x256xf32>,
    %c1 = arith.constant 1 : index
    %c0_17 = arith.constant 0 : index
    %c0_18 = arith.constant 0 : index
    %29 = vector.load %arg6[%c1, %c0_17, %c0_18] : memref<2x8x256xf32, #tpu.memory_space<vmem>>, vector<1x8x256xf32>
    %30 = vector.shape_cast %29 : vector<1x8x256xf32> to vector<8x256xf32>
    %c1_19 = arith.constant 1 : index
    %c0_20 = arith.constant 0 : index
    %c0_21 = arith.constant 0 : index
    %31 = vector.load %arg7[%c1_19, %c0_20, %c0_21] : memref<2x8x256xf32, #tpu.memory_space<vmem>>, vector<1x8x256xf32>
    %32 = vector.shape_cast %31 : vector<1x8x256xf32> to vector<8x256xf32>
    %c1_22 = arith.constant 1 : index
    %c0_23 = arith.constant 0 : index
    %c0_24 = arith.constant 0 : index
    %33 = vector.load %arg2[%c1_22, %c0_23, %c0_24] : memref<2x4x256xf32, #tpu.memory_space<vmem>>, vector<1x4x256xf32>
    %34 = vector.shape_cast %33 : vector<1x4x256xf32> to vector<4x256xf32>
    %cst_25 = arith.constant dense<0xFF800000> : vector<256xf32>
    %35 = vector.multi_reduction <maximumf>, %34, %cst_25 [0] : vector<4x256xf32> to vector<256xf32>
    %36 = vector.shape_cast %35 : vector<256xf32> to vector<1x256xf32>
    %37 = vector.broadcast %36 : vector<1x256xf32> to vector<8x256xf32>
    %38 = arith.maximumf %30, %37 : vector<8x256xf32>
    %cst_26 = arith.constant dense<0.000000e+00> : vector<256xf32>
    %39 = vector.multi_reduction <add>, %34, %cst_26 [0] : vector<4x256xf32> to vector<256xf32>
    %40 = vector.shape_cast %39 : vector<256xf32> to vector<1x256xf32>
    %41 = tpu.iota {dimensions = array<i32: 0>} : vector<8x1xi32>
    %c0_i32_27 = arith.constant 0 : i32
    %42 = vector.broadcast %c0_i32_27 : i32 to vector<8x1xi32>
    %43 = arith.cmpi eq, %41, %42 : vector<8x1xi32>
    %44 = vector.broadcast %40 : vector<1x256xf32> to vector<8x256xf32>
    %45 = arith.addf %32, %44 : vector<8x256xf32>
    %46 = vector.shape_cast %43 : vector<8x1xi1> to vector<8x1xi1>
    %47 = vector.broadcast %46 : vector<8x1xi1> to vector<8x256xi1>
    %48 = arith.select %47, %45, %32 : vector<8x256xi1>, vector<8x256xf32>
    %c1_28 = arith.constant 1 : index
    %c0_29 = arith.constant 0 : index
    %c0_30 = arith.constant 0 : index
    %49 = vector.load %arg6[%c1_28, %c0_29, %c0_30] : memref<2x8x256xf32, #tpu.memory_space<vmem>>, vector<1x8x256xf32>
    %50 = vector.shape_cast %49 : vector<1x8x256xf32> to vector<8x256xf32>
    %51 = vector.shape_cast %38 : vector<8x256xf32> to vector<1x8x256xf32>
    tpu.vector_store %arg6[%c1_28, %c0_29, %c0_30], %51 {strides = array<i32>} : memref<2x8x256xf32, #tpu.memory_space<vmem>>, vector<1x8x256xf32>,
    %c1_31 = arith.constant 1 : index
    %c0_32 = arith.constant 0 : index
    %c0_33 = arith.constant 0 : index
    %52 = vector.load %arg7[%c1_31, %c0_32, %c0_33] : memref<2x8x256xf32, #tpu.memory_space<vmem>>, vector<1x8x256xf32>
    %53 = vector.shape_cast %52 : vector<1x8x256xf32> to vector<8x256xf32>
    %54 = vector.shape_cast %48 : vector<8x256xf32> to vector<1x8x256xf32>
    tpu.vector_store %arg7[%c1_31, %c0_32, %c0_33], %54 {strides = array<i32>} : memref<2x8x256xf32, #tpu.memory_space<vmem>>, vector<1x8x256xf32>,
    %c0_i32_34 = arith.constant 0 : i32
    %55 = arith.cmpi eq, %arg1, %c0_i32_34 : i32
    %56 = arith.extui %55 : i1 to i32
    %c0_i32_35 = arith.constant 0 : i32
    %57 = arith.cmpi ne, %56, %c0_i32_35 : i32
    scf.if %57 {
      %c0_36 = arith.constant 0 : index
      %c0_37 = arith.constant 0 : index
      %c0_38 = arith.constant 0 : index
      %58 = vector.load %arg6[%c0_36, %c0_37, %c0_38] : memref<2x8x256xf32, #tpu.memory_space<vmem>>, vector<1x8x256xf32>
      %59 = vector.shape_cast %58 : vector<1x8x256xf32> to vector<8x256xf32>
      %cst_39 = arith.constant dense<0xFF800000> : vector<256xf32>
      %60 = vector.multi_reduction <maximumf>, %59, %cst_39 [0] : vector<8x256xf32> to vector<256xf32>
      %61 = vector.shape_cast %60 : vector<256xf32> to vector<1x256xf32>
      %c1_40 = arith.constant 1 : index
      %c0_41 = arith.constant 0 : index
      %c0_42 = arith.constant 0 : index
      %62 = vector.load %arg6[%c1_40, %c0_41, %c0_42] : memref<2x8x256xf32, #tpu.memory_space<vmem>>, vector<1x8x256xf32>
      %63 = vector.shape_cast %62 : vector<1x8x256xf32> to vector<8x256xf32>
      %cst_43 = arith.constant dense<0xFF800000> : vector<256xf32>
      %64 = vector.multi_reduction <maximumf>, %63, %cst_43 [0] : vector<8x256xf32> to vector<256xf32>
      %65 = vector.shape_cast %64 : vector<256xf32> to vector<1x256xf32>
      %c0_44 = arith.constant 0 : index
      %c0_45 = arith.constant 0 : index
      %c0_46 = arith.constant 0 : index
      %66 = vector.load %arg7[%c0_44, %c0_45, %c0_46] : memref<2x8x256xf32, #tpu.memory_space<vmem>>, vector<1x8x256xf32>
      %67 = vector.shape_cast %66 : vector<1x8x256xf32> to vector<8x256xf32>
      %cst_47 = arith.constant dense<0.000000e+00> : vector<256xf32>
      %68 = vector.multi_reduction <add>, %67, %cst_47 [0] : vector<8x256xf32> to vector<256xf32>
      %69 = vector.shape_cast %68 : vector<256xf32> to vector<1x256xf32>
      %cst_48 = arith.constant 2.500000e-01 : f32
      %70 = vector.broadcast %cst_48 : f32 to vector<1x256xf32>
      %71 = arith.mulf %69, %70 : vector<1x256xf32>
      %c1_49 = arith.constant 1 : index
      %c0_50 = arith.constant 0 : index
      %c0_51 = arith.constant 0 : index
      %72 = vector.load %arg7[%c1_49, %c0_50, %c0_51] : memref<2x8x256xf32, #tpu.memory_space<vmem>>, vector<1x8x256xf32>
      %73 = vector.shape_cast %72 : vector<1x8x256xf32> to vector<8x256xf32>
      %cst_52 = arith.constant dense<0.000000e+00> : vector<256xf32>
      %74 = vector.multi_reduction <add>, %73, %cst_52 [0] : vector<8x256xf32> to vector<256xf32>
      %75 = vector.shape_cast %74 : vector<256xf32> to vector<1x256xf32>
      %cst_53 = arith.constant 2.500000e-01 : f32
      %76 = vector.broadcast %cst_53 : f32 to vector<1x256xf32>
      %77 = arith.mulf %75, %76 : vector<1x256xf32>
      %78 = tpu.concatenate %61, %65, %71, %77 in 0 : vector<1x256xf32>, vector<1x256xf32>, vector<1x256xf32>, vector<1x256xf32> -> vector<4x256xf32>
      %c0_54 = arith.constant 0 : index
      %c128 = arith.constant 128 : index
      %79 = vector.load %arg8[%c0_54, %c128] : memref<4x512xf32, #tpu.memory_space<vmem>>, vector<4x256xf32>
      tpu.vector_store %arg8[%c0_54, %c128], %78 {strides = array<i32>} : memref<4x512xf32, #tpu.memory_space<vmem>>, vector<4x256xf32>,
      %80 = tpu.iota {dimensions = array<i32: 1>} : vector<1x256xi32>
      %c16_i32 = arith.constant 16 : i32
      %c0_i32_55 = arith.constant 0 : i32
      %81 = arith.cmpi eq, %c16_i32, %c0_i32_55 : i32
      %c1_i32 = arith.constant 1 : i32
      %82 = arith.select %81, %c1_i32, %c16_i32 : i32
      %83 = vector.broadcast %82 : i32 to vector<1x256xi32>
      %84 = arith.remsi %80, %83 : vector<1x256xi32>
      %c0_i32_56 = arith.constant 0 : i32
      %85 = vector.broadcast %c0_i32_56 : i32 to vector<1x256xi32>
      %86 = arith.cmpi ne, %84, %85 : vector<1x256xi32>
      %c0_i32_57 = arith.constant 0 : i32
      %87 = vector.broadcast %c0_i32_57 : i32 to vector<1x256xi32>
      %88 = arith.cmpi slt, %84, %87 : vector<1x256xi32>
      %c0_i32_58 = arith.constant 0 : i32
      %89 = arith.cmpi slt, %82, %c0_i32_58 : i32
      %90 = vector.broadcast %89 : i1 to vector<1x256xi1>
      %91 = vector.broadcast %90 : vector<1x256xi1> to vector<1x256xi1>
      %92 = arith.xori %88, %91 : vector<1x256xi1>
      %93 = arith.andi %92, %86 : vector<1x256xi1>
      %94 = vector.broadcast %82 : i32 to vector<1x256xi32>
      %95 = arith.addi %84, %94 : vector<1x256xi32>
      %96 = arith.select %93, %95, %84 : vector<1x256xi1>, vector<1x256xi32>
      %cst_59 = arith.constant 0.000000e+00 : f32
      %97 = vector.broadcast %cst_59 : f32 to vector<4x256xf32>
      %cst_60 = arith.constant 0.000000e+00 : f32
      %98 = vector.broadcast %cst_60 : f32 to vector<4x256xf32>
      %c0_61 = arith.constant 0 : index
      %c77 = arith.constant 77 : index
      %99 = vector.load %arg8[%c0_61, %c77] : memref<4x512xf32, #tpu.memory_space<vmem>>, vector<4x256xf32>
      %c0_62 = arith.constant 0 : index
      %c0_63 = arith.constant 0 : index
      %c0_64 = arith.constant 0 : index
      %100 = vector.load %arg3[%c0_62, %c0_63, %c0_64] : memref<49x4x1xf32, #tpu.memory_space<vmem>>, vector<1x4x1xf32>
      %101 = vector.shape_cast %100 : vector<1x4x1xf32> to vector<4x1xf32>
      %102 = vector.broadcast %101 : vector<4x1xf32> to vector<4x256xf32>
      %103 = arith.mulf %102, %99 : vector<4x256xf32>
      %104 = arith.addf %98, %103 : vector<4x256xf32>
      %c0_65 = arith.constant 0 : index
      %c93 = arith.constant 93 : index
      %105 = vector.load %arg8[%c0_65, %c93] : memref<4x512xf32, #tpu.memory_space<vmem>>, vector<4x256xf32>
      %c7 = arith.constant 7 : index
      %c0_66 = arith.constant 0 : index
      %c0_67 = arith.constant 0 : index
      %106 = vector.load %arg3[%c7, %c0_66, %c0_67] : memref<49x4x1xf32, #tpu.memory_space<vmem>>, vector<1x4x1xf32>
      %107 = vector.shape_cast %106 : vector<1x4x1xf32> to vector<4x1xf32>
      %108 = vector.broadcast %107 : vector<4x1xf32> to vector<4x256xf32>
      %109 = arith.mulf %108, %105 : vector<4x256xf32>
      %110 = arith.addf %104, %109 : vector<4x256xf32>
      %c0_68 = arith.constant 0 : index
      %c109 = arith.constant 109 : index
      %111 = vector.load %arg8[%c0_68, %c109] : memref<4x512xf32, #tpu.memory_space<vmem>>, vector<4x256xf32>
      %c14 = arith.constant 14 : index
      %c0_69 = arith.constant 0 : index
      %c0_70 = arith.constant 0 : index
      %112 = vector.load %arg3[%c14, %c0_69, %c0_70] : memref<49x4x1xf32, #tpu.memory_space<vmem>>, vector<1x4x1xf32>
      %113 = vector.shape_cast %112 : vector<1x4x1xf32> to vector<4x1xf32>
      %114 = vector.broadcast %113 : vector<4x1xf32> to vector<4x256xf32>
      %115 = arith.mulf %114, %111 : vector<4x256xf32>
      %116 = arith.addf %110, %115 : vector<4x256xf32>
      %c0_71 = arith.constant 0 : index
      %c125 = arith.constant 125 : index
      %117 = vector.load %arg8[%c0_71, %c125] : memref<4x512xf32, #tpu.memory_space<vmem>>, vector<4x256xf32>
      %c21 = arith.constant 21 : index
      %c0_72 = arith.constant 0 : index
      %c0_73 = arith.constant 0 : index
      %118 = vector.load %arg3[%c21, %c0_72, %c0_73] : memref<49x4x1xf32, #tpu.memory_space<vmem>>, vector<1x4x1xf32>
      %119 = vector.shape_cast %118 : vector<1x4x1xf32> to vector<4x1xf32>
      %120 = vector.broadcast %119 : vector<4x1xf32> to vector<4x256xf32>
      %121 = arith.mulf %120, %117 : vector<4x256xf32>
      %122 = arith.addf %116, %121 : vector<4x256xf32>
      %c0_74 = arith.constant 0 : index
      %c141 = arith.constant 141 : index
      %123 = vector.load %arg8[%c0_74, %c141] : memref<4x512xf32, #tpu.memory_space<vmem>>, vector<4x256xf32>
      %c28 = arith.constant 28 : index
      %c0_75 = arith.constant 0 : index
      %c0_76 = arith.constant 0 : index
      %124 = vector.load %arg3[%c28, %c0_75, %c0_76] : memref<49x4x1xf32, #tpu.memory_space<vmem>>, vector<1x4x1xf32>
      %125 = vector.shape_cast %124 : vector<1x4x1xf32> to vector<4x1xf32>
      %126 = vector.broadcast %125 : vector<4x1xf32> to vector<4x256xf32>
      %127 = arith.mulf %126, %123 : vector<4x256xf32>
      %128 = arith.addf %122, %127 : vector<4x256xf32>
      %c0_77 = arith.constant 0 : index
      %c157 = arith.constant 157 : index
      %129 = vector.load %arg8[%c0_77, %c157] : memref<4x512xf32, #tpu.memory_space<vmem>>, vector<4x256xf32>
      %c35 = arith.constant 35 : index
      %c0_78 = arith.constant 0 : index
      %c0_79 = arith.constant 0 : index
      %130 = vector.load %arg3[%c35, %c0_78, %c0_79] : memref<49x4x1xf32, #tpu.memory_space<vmem>>, vector<1x4x1xf32>
      %131 = vector.shape_cast %130 : vector<1x4x1xf32> to vector<4x1xf32>
      %132 = vector.broadcast %131 : vector<4x1xf32> to vector<4x256xf32>
      %133 = arith.mulf %132, %129 : vector<4x256xf32>
      %134 = arith.addf %128, %133 : vector<4x256xf32>
      %c0_80 = arith.constant 0 : index
      %c173 = arith.constant 173 : index
      %135 = vector.load %arg8[%c0_80, %c173] : memref<4x512xf32, #tpu.memory_space<vmem>>, vector<4x256xf32>
      %c42 = arith.constant 42 : index
      %c0_81 = arith.constant 0 : index
      %c0_82 = arith.constant 0 : index
      %136 = vector.load %arg3[%c42, %c0_81, %c0_82] : memref<49x4x1xf32, #tpu.memory_space<vmem>>, vector<1x4x1xf32>
      %137 = vector.shape_cast %136 : vector<1x4x1xf32> to vector<4x1xf32>
      %138 = vector.broadcast %137 : vector<4x1xf32> to vector<4x256xf32>
      %139 = arith.mulf %138, %135 : vector<4x256xf32>
      %140 = arith.addf %134, %139 : vector<4x256xf32>
      %c3_i32 = arith.constant 3 : i32
      %141 = vector.broadcast %c3_i32 : i32 to vector<1x256xi32>
      %142 = arith.cmpi sge, %96, %141 : vector<1x256xi32>
      %cst_83 = arith.constant 0.000000e+00 : f32
      %143 = vector.shape_cast %142 : vector<1x256xi1> to vector<1x256xi1>
      %144 = vector.broadcast %143 : vector<1x256xi1> to vector<4x256xi1>
      %145 = vector.broadcast %cst_83 : f32 to vector<4x256xf32>
      %146 = arith.select %144, %140, %145 : vector<4x256xi1>, vector<4x256xf32>
      %147 = arith.addf %97, %146 : vector<4x256xf32>
      %cst_84 = arith.constant 0.000000e+00 : f32
      %148 = vector.broadcast %cst_84 : f32 to vector<4x256xf32>
      %c0_85 = arith.constant 0 : index
      %c78 = arith.constant 78 : index
      %149 = vector.load %arg8[%c0_85, %c78] : memref<4x512xf32, #tpu.memory_space<vmem>>, vector<4x256xf32>
      %c1_86 = arith.constant 1 : index
      %c0_87 = arith.constant 0 : index
      %c0_88 = arith.constant 0 : index
      %150 = vector.load %arg3[%c1_86, %c0_87, %c0_88] : memref<49x4x1xf32, #tpu.memory_space<vmem>>, vector<1x4x1xf32>
      %151 = vector.shape_cast %150 : vector<1x4x1xf32> to vector<4x1xf32>
      %152 = vector.broadcast %151 : vector<4x1xf32> to vector<4x256xf32>
      %153 = arith.mulf %152, %149 : vector<4x256xf32>
      %154 = arith.addf %148, %153 : vector<4x256xf32>
      %c0_89 = arith.constant 0 : index
      %c94 = arith.constant 94 : index
      %155 = vector.load %arg8[%c0_89, %c94] : memref<4x512xf32, #tpu.memory_space<vmem>>, vector<4x256xf32>
      %c8 = arith.constant 8 : index
      %c0_90 = arith.constant 0 : index
      %c0_91 = arith.constant 0 : index
      %156 = vector.load %arg3[%c8, %c0_90, %c0_91] : memref<49x4x1xf32, #tpu.memory_space<vmem>>, vector<1x4x1xf32>
      %157 = vector.shape_cast %156 : vector<1x4x1xf32> to vector<4x1xf32>
      %158 = vector.broadcast %157 : vector<4x1xf32> to vector<4x256xf32>
      %159 = arith.mulf %158, %155 : vector<4x256xf32>
      %160 = arith.addf %154, %159 : vector<4x256xf32>
      %c0_92 = arith.constant 0 : index
      %c110 = arith.constant 110 : index
      %161 = vector.load %arg8[%c0_92, %c110] : memref<4x512xf32, #tpu.memory_space<vmem>>, vector<4x256xf32>
      %c15 = arith.constant 15 : index
      %c0_93 = arith.constant 0 : index
      %c0_94 = arith.constant 0 : index
      %162 = vector.load %arg3[%c15, %c0_93, %c0_94] : memref<49x4x1xf32, #tpu.memory_space<vmem>>, vector<1x4x1xf32>
      %163 = vector.shape_cast %162 : vector<1x4x1xf32> to vector<4x1xf32>
      %164 = vector.broadcast %163 : vector<4x1xf32> to vector<4x256xf32>
      %165 = arith.mulf %164, %161 : vector<4x256xf32>
      %166 = arith.addf %160, %165 : vector<4x256xf32>
      %c0_95 = arith.constant 0 : index
      %c126 = arith.constant 126 : index
      %167 = vector.load %arg8[%c0_95, %c126] : memref<4x512xf32, #tpu.memory_space<vmem>>, vector<4x256xf32>
      %c22 = arith.constant 22 : index
      %c0_96 = arith.constant 0 : index
      %c0_97 = arith.constant 0 : index
      %168 = vector.load %arg3[%c22, %c0_96, %c0_97] : memref<49x4x1xf32, #tpu.memory_space<vmem>>, vector<1x4x1xf32>
      %169 = vector.shape_cast %168 : vector<1x4x1xf32> to vector<4x1xf32>
      %170 = vector.broadcast %169 : vector<4x1xf32> to vector<4x256xf32>
      %171 = arith.mulf %170, %167 : vector<4x256xf32>
      %172 = arith.addf %166, %171 : vector<4x256xf32>
      %c0_98 = arith.constant 0 : index
      %c142 = arith.constant 142 : index
      %173 = vector.load %arg8[%c0_98, %c142] : memref<4x512xf32, #tpu.memory_space<vmem>>, vector<4x256xf32>
      %c29 = arith.constant 29 : index
      %c0_99 = arith.constant 0 : index
      %c0_100 = arith.constant 0 : index
      %174 = vector.load %arg3[%c29, %c0_99, %c0_100] : memref<49x4x1xf32, #tpu.memory_space<vmem>>, vector<1x4x1xf32>
      %175 = vector.shape_cast %174 : vector<1x4x1xf32> to vector<4x1xf32>
      %176 = vector.broadcast %175 : vector<4x1xf32> to vector<4x256xf32>
      %177 = arith.mulf %176, %173 : vector<4x256xf32>
      %178 = arith.addf %172, %177 : vector<4x256xf32>
      %c0_101 = arith.constant 0 : index
      %c158 = arith.constant 158 : index
      %179 = vector.load %arg8[%c0_101, %c158] : memref<4x512xf32, #tpu.memory_space<vmem>>, vector<4x256xf32>
      %c36 = arith.constant 36 : index
      %c0_102 = arith.constant 0 : index
      %c0_103 = arith.constant 0 : index
      %180 = vector.load %arg3[%c36, %c0_102, %c0_103] : memref<49x4x1xf32, #tpu.memory_space<vmem>>, vector<1x4x1xf32>
      %181 = vector.shape_cast %180 : vector<1x4x1xf32> to vector<4x1xf32>
      %182 = vector.broadcast %181 : vector<4x1xf32> to vector<4x256xf32>
      %183 = arith.mulf %182, %179 : vector<4x256xf32>
      %184 = arith.addf %178, %183 : vector<4x256xf32>
      %c0_104 = arith.constant 0 : index
      %c174 = arith.constant 174 : index
      %185 = vector.load %arg8[%c0_104, %c174] : memref<4x512xf32, #tpu.memory_space<vmem>>, vector<4x256xf32>
      %c43 = arith.constant 43 : index
      %c0_105 = arith.constant 0 : index
      %c0_106 = arith.constant 0 : index
      %186 = vector.load %arg3[%c43, %c0_105, %c0_106] : memref<49x4x1xf32, #tpu.memory_space<vmem>>, vector<1x4x1xf32>
      %187 = vector.shape_cast %186 : vector<1x4x1xf32> to vector<4x1xf32>
      %188 = vector.broadcast %187 : vector<4x1xf32> to vector<4x256xf32>
      %189 = arith.mulf %188, %185 : vector<4x256xf32>
      %190 = arith.addf %184, %189 : vector<4x256xf32>
      %c2_i32 = arith.constant 2 : i32
      %191 = vector.broadcast %c2_i32 : i32 to vector<1x256xi32>
      %192 = arith.cmpi sge, %96, %191 : vector<1x256xi32>
      %cst_107 = arith.constant 0.000000e+00 : f32
      %193 = vector.shape_cast %192 : vector<1x256xi1> to vector<1x256xi1>
      %194 = vector.broadcast %193 : vector<1x256xi1> to vector<4x256xi1>
      %195 = vector.broadcast %cst_107 : f32 to vector<4x256xf32>
      %196 = arith.select %194, %190, %195 : vector<4x256xi1>, vector<4x256xf32>
      %197 = arith.addf %147, %196 : vector<4x256xf32>
      %cst_108 = arith.constant 0.000000e+00 : f32
      %198 = vector.broadcast %cst_108 : f32 to vector<4x256xf32>
      %c0_109 = arith.constant 0 : index
      %c79 = arith.constant 79 : index
      %199 = vector.load %arg8[%c0_109, %c79] : memref<4x512xf32, #tpu.memory_space<vmem>>, vector<4x256xf32>
      %c2 = arith.constant 2 : index
      %c0_110 = arith.constant 0 : index
      %c0_111 = arith.constant 0 : index
      %200 = vector.load %arg3[%c2, %c0_110, %c0_111] : memref<49x4x1xf32, #tpu.memory_space<vmem>>, vector<1x4x1xf32>
      %201 = vector.shape_cast %200 : vector<1x4x1xf32> to vector<4x1xf32>
      %202 = vector.broadcast %201 : vector<4x1xf32> to vector<4x256xf32>
      %203 = arith.mulf %202, %199 : vector<4x256xf32>
      %204 = arith.addf %198, %203 : vector<4x256xf32>
      %c0_112 = arith.constant 0 : index
      %c95 = arith.constant 95 : index
      %205 = vector.load %arg8[%c0_112, %c95] : memref<4x512xf32, #tpu.memory_space<vmem>>, vector<4x256xf32>
      %c9 = arith.constant 9 : index
      %c0_113 = arith.constant 0 : index
      %c0_114 = arith.constant 0 : index
      %206 = vector.load %arg3[%c9, %c0_113, %c0_114] : memref<49x4x1xf32, #tpu.memory_space<vmem>>, vector<1x4x1xf32>
      %207 = vector.shape_cast %206 : vector<1x4x1xf32> to vector<4x1xf32>
      %208 = vector.broadcast %207 : vector<4x1xf32> to vector<4x256xf32>
      %209 = arith.mulf %208, %205 : vector<4x256xf32>
      %210 = arith.addf %204, %209 : vector<4x256xf32>
      %c0_115 = arith.constant 0 : index
      %c111 = arith.constant 111 : index
      %211 = vector.load %arg8[%c0_115, %c111] : memref<4x512xf32, #tpu.memory_space<vmem>>, vector<4x256xf32>
      %c16 = arith.constant 16 : index
      %c0_116 = arith.constant 0 : index
      %c0_117 = arith.constant 0 : index
      %212 = vector.load %arg3[%c16, %c0_116, %c0_117] : memref<49x4x1xf32, #tpu.memory_space<vmem>>, vector<1x4x1xf32>
      %213 = vector.shape_cast %212 : vector<1x4x1xf32> to vector<4x1xf32>
      %214 = vector.broadcast %213 : vector<4x1xf32> to vector<4x256xf32>
      %215 = arith.mulf %214, %211 : vector<4x256xf32>
      %216 = arith.addf %210, %215 : vector<4x256xf32>
      %c0_118 = arith.constant 0 : index
      %c127 = arith.constant 127 : index
      %217 = vector.load %arg8[%c0_118, %c127] : memref<4x512xf32, #tpu.memory_space<vmem>>, vector<4x256xf32>
      %c23 = arith.constant 23 : index
      %c0_119 = arith.constant 0 : index
      %c0_120 = arith.constant 0 : index
      %218 = vector.load %arg3[%c23, %c0_119, %c0_120] : memref<49x4x1xf32, #tpu.memory_space<vmem>>, vector<1x4x1xf32>
      %219 = vector.shape_cast %218 : vector<1x4x1xf32> to vector<4x1xf32>
      %220 = vector.broadcast %219 : vector<4x1xf32> to vector<4x256xf32>
      %221 = arith.mulf %220, %217 : vector<4x256xf32>
      %222 = arith.addf %216, %221 : vector<4x256xf32>
      %c0_121 = arith.constant 0 : index
      %c143 = arith.constant 143 : index
      %223 = vector.load %arg8[%c0_121, %c143] : memref<4x512xf32, #tpu.memory_space<vmem>>, vector<4x256xf32>
      %c30 = arith.constant 30 : index
      %c0_122 = arith.constant 0 : index
      %c0_123 = arith.constant 0 : index
      %224 = vector.load %arg3[%c30, %c0_122, %c0_123] : memref<49x4x1xf32, #tpu.memory_space<vmem>>, vector<1x4x1xf32>
      %225 = vector.shape_cast %224 : vector<1x4x1xf32> to vector<4x1xf32>
      %226 = vector.broadcast %225 : vector<4x1xf32> to vector<4x256xf32>
      %227 = arith.mulf %226, %223 : vector<4x256xf32>
      %228 = arith.addf %222, %227 : vector<4x256xf32>
      %c0_124 = arith.constant 0 : index
      %c159 = arith.constant 159 : index
      %229 = vector.load %arg8[%c0_124, %c159] : memref<4x512xf32, #tpu.memory_space<vmem>>, vector<4x256xf32>
      %c37 = arith.constant 37 : index
      %c0_125 = arith.constant 0 : index
      %c0_126 = arith.constant 0 : index
      %230 = vector.load %arg3[%c37, %c0_125, %c0_126] : memref<49x4x1xf32, #tpu.memory_space<vmem>>, vector<1x4x1xf32>
      %231 = vector.shape_cast %230 : vector<1x4x1xf32> to vector<4x1xf32>
      %232 = vector.broadcast %231 : vector<4x1xf32> to vector<4x256xf32>
      %233 = arith.mulf %232, %229 : vector<4x256xf32>
      %234 = arith.addf %228, %233 : vector<4x256xf32>
      %c0_127 = arith.constant 0 : index
      %c175 = arith.constant 175 : index
      %235 = vector.load %arg8[%c0_127, %c175] : memref<4x512xf32, #tpu.memory_space<vmem>>, vector<4x256xf32>
      %c44 = arith.constant 44 : index
      %c0_128 = arith.constant 0 : index
      %c0_129 = arith.constant 0 : index
      %236 = vector.load %arg3[%c44, %c0_128, %c0_129] : memref<49x4x1xf32, #tpu.memory_space<vmem>>, vector<1x4x1xf32>
      %237 = vector.shape_cast %236 : vector<1x4x1xf32> to vector<4x1xf32>
      %238 = vector.broadcast %237 : vector<4x1xf32> to vector<4x256xf32>
      %239 = arith.mulf %238, %235 : vector<4x256xf32>
      %240 = arith.addf %234, %239 : vector<4x256xf32>
      %c1_i32_130 = arith.constant 1 : i32
      %241 = vector.broadcast %c1_i32_130 : i32 to vector<1x256xi32>
      %242 = arith.cmpi sge, %96, %241 : vector<1x256xi32>
      %cst_131 = arith.constant 0.000000e+00 : f32
      %243 = vector.shape_cast %242 : vector<1x256xi1> to vector<1x256xi1>
      %244 = vector.broadcast %243 : vector<1x256xi1> to vector<4x256xi1>
      %245 = vector.broadcast %cst_131 : f32 to vector<4x256xf32>
      %246 = arith.select %244, %240, %245 : vector<4x256xi1>, vector<4x256xf32>
      %247 = arith.addf %197, %246 : vector<4x256xf32>
      %cst_132 = arith.constant 0.000000e+00 : f32
      %248 = vector.broadcast %cst_132 : f32 to vector<4x256xf32>
      %c0_133 = arith.constant 0 : index
      %c80 = arith.constant 80 : index
      %249 = vector.load %arg8[%c0_133, %c80] : memref<4x512xf32, #tpu.memory_space<vmem>>, vector<4x256xf32>
      %c3 = arith.constant 3 : index
      %c0_134 = arith.constant 0 : index
      %c0_135 = arith.constant 0 : index
      %250 = vector.load %arg3[%c3, %c0_134, %c0_135] : memref<49x4x1xf32, #tpu.memory_space<vmem>>, vector<1x4x1xf32>
      %251 = vector.shape_cast %250 : vector<1x4x1xf32> to vector<4x1xf32>
      %252 = vector.broadcast %251 : vector<4x1xf32> to vector<4x256xf32>
      %253 = arith.mulf %252, %249 : vector<4x256xf32>
      %254 = arith.addf %248, %253 : vector<4x256xf32>
      %c0_136 = arith.constant 0 : index
      %c96 = arith.constant 96 : index
      %255 = vector.load %arg8[%c0_136, %c96] : memref<4x512xf32, #tpu.memory_space<vmem>>, vector<4x256xf32>
      %c10 = arith.constant 10 : index
      %c0_137 = arith.constant 0 : index
      %c0_138 = arith.constant 0 : index
      %256 = vector.load %arg3[%c10, %c0_137, %c0_138] : memref<49x4x1xf32, #tpu.memory_space<vmem>>, vector<1x4x1xf32>
      %257 = vector.shape_cast %256 : vector<1x4x1xf32> to vector<4x1xf32>
      %258 = vector.broadcast %257 : vector<4x1xf32> to vector<4x256xf32>
      %259 = arith.mulf %258, %255 : vector<4x256xf32>
      %260 = arith.addf %254, %259 : vector<4x256xf32>
      %c0_139 = arith.constant 0 : index
      %c112 = arith.constant 112 : index
      %261 = vector.load %arg8[%c0_139, %c112] : memref<4x512xf32, #tpu.memory_space<vmem>>, vector<4x256xf32>
      %c17 = arith.constant 17 : index
      %c0_140 = arith.constant 0 : index
      %c0_141 = arith.constant 0 : index
      %262 = vector.load %arg3[%c17, %c0_140, %c0_141] : memref<49x4x1xf32, #tpu.memory_space<vmem>>, vector<1x4x1xf32>
      %263 = vector.shape_cast %262 : vector<1x4x1xf32> to vector<4x1xf32>
      %264 = vector.broadcast %263 : vector<4x1xf32> to vector<4x256xf32>
      %265 = arith.mulf %264, %261 : vector<4x256xf32>
      %266 = arith.addf %260, %265 : vector<4x256xf32>
      %c0_142 = arith.constant 0 : index
      %c128_143 = arith.constant 128 : index
      %267 = vector.load %arg8[%c0_142, %c128_143] : memref<4x512xf32, #tpu.memory_space<vmem>>, vector<4x256xf32>
      %c24 = arith.constant 24 : index
      %c0_144 = arith.constant 0 : index
      %c0_145 = arith.constant 0 : index
      %268 = vector.load %arg3[%c24, %c0_144, %c0_145] : memref<49x4x1xf32, #tpu.memory_space<vmem>>, vector<1x4x1xf32>
      %269 = vector.shape_cast %268 : vector<1x4x1xf32> to vector<4x1xf32>
      %270 = vector.broadcast %269 : vector<4x1xf32> to vector<4x256xf32>
      %271 = arith.mulf %270, %267 : vector<4x256xf32>
      %272 = arith.addf %266, %271 : vector<4x256xf32>
      %c0_146 = arith.constant 0 : index
      %c144 = arith.constant 144 : index
      %273 = vector.load %arg8[%c0_146, %c144] : memref<4x512xf32, #tpu.memory_space<vmem>>, vector<4x256xf32>
      %c31 = arith.constant 31 : index
      %c0_147 = arith.constant 0 : index
      %c0_148 = arith.constant 0 : index
      %274 = vector.load %arg3[%c31, %c0_147, %c0_148] : memref<49x4x1xf32, #tpu.memory_space<vmem>>, vector<1x4x1xf32>
      %275 = vector.shape_cast %274 : vector<1x4x1xf32> to vector<4x1xf32>
      %276 = vector.broadcast %275 : vector<4x1xf32> to vector<4x256xf32>
      %277 = arith.mulf %276, %273 : vector<4x256xf32>
      %278 = arith.addf %272, %277 : vector<4x256xf32>
      %c0_149 = arith.constant 0 : index
      %c160 = arith.constant 160 : index
      %279 = vector.load %arg8[%c0_149, %c160] : memref<4x512xf32, #tpu.memory_space<vmem>>, vector<4x256xf32>
      %c38 = arith.constant 38 : index
      %c0_150 = arith.constant 0 : index
      %c0_151 = arith.constant 0 : index
      %280 = vector.load %arg3[%c38, %c0_150, %c0_151] : memref<49x4x1xf32, #tpu.memory_space<vmem>>, vector<1x4x1xf32>
      %281 = vector.shape_cast %280 : vector<1x4x1xf32> to vector<4x1xf32>
      %282 = vector.broadcast %281 : vector<4x1xf32> to vector<4x256xf32>
      %283 = arith.mulf %282, %279 : vector<4x256xf32>
      %284 = arith.addf %278, %283 : vector<4x256xf32>
      %c0_152 = arith.constant 0 : index
      %c176 = arith.constant 176 : index
      %285 = vector.load %arg8[%c0_152, %c176] : memref<4x512xf32, #tpu.memory_space<vmem>>, vector<4x256xf32>
      %c45 = arith.constant 45 : index
      %c0_153 = arith.constant 0 : index
      %c0_154 = arith.constant 0 : index
      %286 = vector.load %arg3[%c45, %c0_153, %c0_154] : memref<49x4x1xf32, #tpu.memory_space<vmem>>, vector<1x4x1xf32>
      %287 = vector.shape_cast %286 : vector<1x4x1xf32> to vector<4x1xf32>
      %288 = vector.broadcast %287 : vector<4x1xf32> to vector<4x256xf32>
      %289 = arith.mulf %288, %285 : vector<4x256xf32>
      %290 = arith.addf %284, %289 : vector<4x256xf32>
      %291 = arith.addf %247, %290 : vector<4x256xf32>
      %cst_155 = arith.constant 0.000000e+00 : f32
      %292 = vector.broadcast %cst_155 : f32 to vector<4x256xf32>
      %c0_156 = arith.constant 0 : index
      %c81 = arith.constant 81 : index
      %293 = vector.load %arg8[%c0_156, %c81] : memref<4x512xf32, #tpu.memory_space<vmem>>, vector<4x256xf32>
      %c4 = arith.constant 4 : index
      %c0_157 = arith.constant 0 : index
      %c0_158 = arith.constant 0 : index
      %294 = vector.load %arg3[%c4, %c0_157, %c0_158] : memref<49x4x1xf32, #tpu.memory_space<vmem>>, vector<1x4x1xf32>
      %295 = vector.shape_cast %294 : vector<1x4x1xf32> to vector<4x1xf32>
      %296 = vector.broadcast %295 : vector<4x1xf32> to vector<4x256xf32>
      %297 = arith.mulf %296, %293 : vector<4x256xf32>
      %298 = arith.addf %292, %297 : vector<4x256xf32>
      %c0_159 = arith.constant 0 : index
      %c97 = arith.constant 97 : index
      %299 = vector.load %arg8[%c0_159, %c97] : memref<4x512xf32, #tpu.memory_space<vmem>>, vector<4x256xf32>
      %c11 = arith.constant 11 : index
      %c0_160 = arith.constant 0 : index
      %c0_161 = arith.constant 0 : index
      %300 = vector.load %arg3[%c11, %c0_160, %c0_161] : memref<49x4x1xf32, #tpu.memory_space<vmem>>, vector<1x4x1xf32>
      %301 = vector.shape_cast %300 : vector<1x4x1xf32> to vector<4x1xf32>
      %302 = vector.broadcast %301 : vector<4x1xf32> to vector<4x256xf32>
      %303 = arith.mulf %302, %299 : vector<4x256xf32>
      %304 = arith.addf %298, %303 : vector<4x256xf32>
      %c0_162 = arith.constant 0 : index
      %c113 = arith.constant 113 : index
      %305 = vector.load %arg8[%c0_162, %c113] : memref<4x512xf32, #tpu.memory_space<vmem>>, vector<4x256xf32>
      %c18 = arith.constant 18 : index
      %c0_163 = arith.constant 0 : index
      %c0_164 = arith.constant 0 : index
      %306 = vector.load %arg3[%c18, %c0_163, %c0_164] : memref<49x4x1xf32, #tpu.memory_space<vmem>>, vector<1x4x1xf32>
      %307 = vector.shape_cast %306 : vector<1x4x1xf32> to vector<4x1xf32>
      %308 = vector.broadcast %307 : vector<4x1xf32> to vector<4x256xf32>
      %309 = arith.mulf %308, %305 : vector<4x256xf32>
      %310 = arith.addf %304, %309 : vector<4x256xf32>
      %c0_165 = arith.constant 0 : index
      %c129 = arith.constant 129 : index
      %311 = vector.load %arg8[%c0_165, %c129] : memref<4x512xf32, #tpu.memory_space<vmem>>, vector<4x256xf32>
      %c25 = arith.constant 25 : index
      %c0_166 = arith.constant 0 : index
      %c0_167 = arith.constant 0 : index
      %312 = vector.load %arg3[%c25, %c0_166, %c0_167] : memref<49x4x1xf32, #tpu.memory_space<vmem>>, vector<1x4x1xf32>
      %313 = vector.shape_cast %312 : vector<1x4x1xf32> to vector<4x1xf32>
      %314 = vector.broadcast %313 : vector<4x1xf32> to vector<4x256xf32>
      %315 = arith.mulf %314, %311 : vector<4x256xf32>
      %316 = arith.addf %310, %315 : vector<4x256xf32>
      %c0_168 = arith.constant 0 : index
      %c145 = arith.constant 145 : index
      %317 = vector.load %arg8[%c0_168, %c145] : memref<4x512xf32, #tpu.memory_space<vmem>>, vector<4x256xf32>
      %c32 = arith.constant 32 : index
      %c0_169 = arith.constant 0 : index
      %c0_170 = arith.constant 0 : index
      %318 = vector.load %arg3[%c32, %c0_169, %c0_170] : memref<49x4x1xf32, #tpu.memory_space<vmem>>, vector<1x4x1xf32>
      %319 = vector.shape_cast %318 : vector<1x4x1xf32> to vector<4x1xf32>
      %320 = vector.broadcast %319 : vector<4x1xf32> to vector<4x256xf32>
      %321 = arith.mulf %320, %317 : vector<4x256xf32>
      %322 = arith.addf %316, %321 : vector<4x256xf32>
      %c0_171 = arith.constant 0 : index
      %c161 = arith.constant 161 : index
      %323 = vector.load %arg8[%c0_171, %c161] : memref<4x512xf32, #tpu.memory_space<vmem>>, vector<4x256xf32>
      %c39 = arith.constant 39 : index
      %c0_172 = arith.constant 0 : index
      %c0_173 = arith.constant 0 : index
      %324 = vector.load %arg3[%c39, %c0_172, %c0_173] : memref<49x4x1xf32, #tpu.memory_space<vmem>>, vector<1x4x1xf32>
      %325 = vector.shape_cast %324 : vector<1x4x1xf32> to vector<4x1xf32>
      %326 = vector.broadcast %325 : vector<4x1xf32> to vector<4x256xf32>
      %327 = arith.mulf %326, %323 : vector<4x256xf32>
      %328 = arith.addf %322, %327 : vector<4x256xf32>
      %c0_174 = arith.constant 0 : index
      %c177 = arith.constant 177 : index
      %329 = vector.load %arg8[%c0_174, %c177] : memref<4x512xf32, #tpu.memory_space<vmem>>, vector<4x256xf32>
      %c46 = arith.constant 46 : index
      %c0_175 = arith.constant 0 : index
      %c0_176 = arith.constant 0 : index
      %330 = vector.load %arg3[%c46, %c0_175, %c0_176] : memref<49x4x1xf32, #tpu.memory_space<vmem>>, vector<1x4x1xf32>
      %331 = vector.shape_cast %330 : vector<1x4x1xf32> to vector<4x1xf32>
      %332 = vector.broadcast %331 : vector<4x1xf32> to vector<4x256xf32>
      %333 = arith.mulf %332, %329 : vector<4x256xf32>
      %334 = arith.addf %328, %333 : vector<4x256xf32>
      %c14_i32 = arith.constant 14 : i32
      %335 = vector.broadcast %c14_i32 : i32 to vector<1x256xi32>
      %336 = arith.cmpi sle, %96, %335 : vector<1x256xi32>
      %cst_177 = arith.constant 0.000000e+00 : f32
      %337 = vector.shape_cast %336 : vector<1x256xi1> to vector<1x256xi1>
      %338 = vector.broadcast %337 : vector<1x256xi1> to vector<4x256xi1>
      %339 = vector.broadcast %cst_177 : f32 to vector<4x256xf32>
      %340 = arith.select %338, %334, %339 : vector<4x256xi1>, vector<4x256xf32>
      %341 = arith.addf %291, %340 : vector<4x256xf32>
      %cst_178 = arith.constant 0.000000e+00 : f32
      %342 = vector.broadcast %cst_178 : f32 to vector<4x256xf32>
      %c0_179 = arith.constant 0 : index
      %c82 = arith.constant 82 : index
      %343 = vector.load %arg8[%c0_179, %c82] : memref<4x512xf32, #tpu.memory_space<vmem>>, vector<4x256xf32>
      %c5 = arith.constant 5 : index
      %c0_180 = arith.constant 0 : index
      %c0_181 = arith.constant 0 : index
      %344 = vector.load %arg3[%c5, %c0_180, %c0_181] : memref<49x4x1xf32, #tpu.memory_space<vmem>>, vector<1x4x1xf32>
      %345 = vector.shape_cast %344 : vector<1x4x1xf32> to vector<4x1xf32>
      %346 = vector.broadcast %345 : vector<4x1xf32> to vector<4x256xf32>
      %347 = arith.mulf %346, %343 : vector<4x256xf32>
      %348 = arith.addf %342, %347 : vector<4x256xf32>
      %c0_182 = arith.constant 0 : index
      %c98 = arith.constant 98 : index
      %349 = vector.load %arg8[%c0_182, %c98] : memref<4x512xf32, #tpu.memory_space<vmem>>, vector<4x256xf32>
      %c12 = arith.constant 12 : index
      %c0_183 = arith.constant 0 : index
      %c0_184 = arith.constant 0 : index
      %350 = vector.load %arg3[%c12, %c0_183, %c0_184] : memref<49x4x1xf32, #tpu.memory_space<vmem>>, vector<1x4x1xf32>
      %351 = vector.shape_cast %350 : vector<1x4x1xf32> to vector<4x1xf32>
      %352 = vector.broadcast %351 : vector<4x1xf32> to vector<4x256xf32>
      %353 = arith.mulf %352, %349 : vector<4x256xf32>
      %354 = arith.addf %348, %353 : vector<4x256xf32>
      %c0_185 = arith.constant 0 : index
      %c114 = arith.constant 114 : index
      %355 = vector.load %arg8[%c0_185, %c114] : memref<4x512xf32, #tpu.memory_space<vmem>>, vector<4x256xf32>
      %c19 = arith.constant 19 : index
      %c0_186 = arith.constant 0 : index
      %c0_187 = arith.constant 0 : index
      %356 = vector.load %arg3[%c19, %c0_186, %c0_187] : memref<49x4x1xf32, #tpu.memory_space<vmem>>, vector<1x4x1xf32>
      %357 = vector.shape_cast %356 : vector<1x4x1xf32> to vector<4x1xf32>
      %358 = vector.broadcast %357 : vector<4x1xf32> to vector<4x256xf32>
      %359 = arith.mulf %358, %355 : vector<4x256xf32>
      %360 = arith.addf %354, %359 : vector<4x256xf32>
      %c0_188 = arith.constant 0 : index
      %c130 = arith.constant 130 : index
      %361 = vector.load %arg8[%c0_188, %c130] : memref<4x512xf32, #tpu.memory_space<vmem>>, vector<4x256xf32>
      %c26 = arith.constant 26 : index
      %c0_189 = arith.constant 0 : index
      %c0_190 = arith.constant 0 : index
      %362 = vector.load %arg3[%c26, %c0_189, %c0_190] : memref<49x4x1xf32, #tpu.memory_space<vmem>>, vector<1x4x1xf32>
      %363 = vector.shape_cast %362 : vector<1x4x1xf32> to vector<4x1xf32>
      %364 = vector.broadcast %363 : vector<4x1xf32> to vector<4x256xf32>
      %365 = arith.mulf %364, %361 : vector<4x256xf32>
      %366 = arith.addf %360, %365 : vector<4x256xf32>
      %c0_191 = arith.constant 0 : index
      %c146 = arith.constant 146 : index
      %367 = vector.load %arg8[%c0_191, %c146] : memref<4x512xf32, #tpu.memory_space<vmem>>, vector<4x256xf32>
      %c33 = arith.constant 33 : index
      %c0_192 = arith.constant 0 : index
      %c0_193 = arith.constant 0 : index
      %368 = vector.load %arg3[%c33, %c0_192, %c0_193] : memref<49x4x1xf32, #tpu.memory_space<vmem>>, vector<1x4x1xf32>
      %369 = vector.shape_cast %368 : vector<1x4x1xf32> to vector<4x1xf32>
      %370 = vector.broadcast %369 : vector<4x1xf32> to vector<4x256xf32>
      %371 = arith.mulf %370, %367 : vector<4x256xf32>
      %372 = arith.addf %366, %371 : vector<4x256xf32>
      %c0_194 = arith.constant 0 : index
      %c162 = arith.constant 162 : index
      %373 = vector.load %arg8[%c0_194, %c162] : memref<4x512xf32, #tpu.memory_space<vmem>>, vector<4x256xf32>
      %c40 = arith.constant 40 : index
      %c0_195 = arith.constant 0 : index
      %c0_196 = arith.constant 0 : index
      %374 = vector.load %arg3[%c40, %c0_195, %c0_196] : memref<49x4x1xf32, #tpu.memory_space<vmem>>, vector<1x4x1xf32>
      %375 = vector.shape_cast %374 : vector<1x4x1xf32> to vector<4x1xf32>
      %376 = vector.broadcast %375 : vector<4x1xf32> to vector<4x256xf32>
      %377 = arith.mulf %376, %373 : vector<4x256xf32>
      %378 = arith.addf %372, %377 : vector<4x256xf32>
      %c0_197 = arith.constant 0 : index
      %c178 = arith.constant 178 : index
      %379 = vector.load %arg8[%c0_197, %c178] : memref<4x512xf32, #tpu.memory_space<vmem>>, vector<4x256xf32>
      %c47 = arith.constant 47 : index
      %c0_198 = arith.constant 0 : index
      %c0_199 = arith.constant 0 : index
      %380 = vector.load %arg3[%c47, %c0_198, %c0_199] : memref<49x4x1xf32, #tpu.memory_space<vmem>>, vector<1x4x1xf32>
      %381 = vector.shape_cast %380 : vector<1x4x1xf32> to vector<4x1xf32>
      %382 = vector.broadcast %381 : vector<4x1xf32> to vector<4x256xf32>
      %383 = arith.mulf %382, %379 : vector<4x256xf32>
      %384 = arith.addf %378, %383 : vector<4x256xf32>
      %c13_i32 = arith.constant 13 : i32
      %385 = vector.broadcast %c13_i32 : i32 to vector<1x256xi32>
      %386 = arith.cmpi sle, %96, %385 : vector<1x256xi32>
      %cst_200 = arith.constant 0.000000e+00 : f32
      %387 = vector.shape_cast %386 : vector<1x256xi1> to vector<1x256xi1>
      %388 = vector.broadcast %387 : vector<1x256xi1> to vector<4x256xi1>
      %389 = vector.broadcast %cst_200 : f32 to vector<4x256xf32>
      %390 = arith.select %388, %384, %389 : vector<4x256xi1>, vector<4x256xf32>
      %391 = arith.addf %341, %390 : vector<4x256xf32>
      %cst_201 = arith.constant 0.000000e+00 : f32
      %392 = vector.broadcast %cst_201 : f32 to vector<4x256xf32>
      %c0_202 = arith.constant 0 : index
      %c83 = arith.constant 83 : index
      %393 = vector.load %arg8[%c0_202, %c83] : memref<4x512xf32, #tpu.memory_space<vmem>>, vector<4x256xf32>
      %c6 = arith.constant 6 : index
      %c0_203 = arith.constant 0 : index
      %c0_204 = arith.constant 0 : index
      %394 = vector.load %arg3[%c6, %c0_203, %c0_204] : memref<49x4x1xf32, #tpu.memory_space<vmem>>, vector<1x4x1xf32>
      %395 = vector.shape_cast %394 : vector<1x4x1xf32> to vector<4x1xf32>
      %396 = vector.broadcast %395 : vector<4x1xf32> to vector<4x256xf32>
      %397 = arith.mulf %396, %393 : vector<4x256xf32>
      %398 = arith.addf %392, %397 : vector<4x256xf32>
      %c0_205 = arith.constant 0 : index
      %c99 = arith.constant 99 : index
      %399 = vector.load %arg8[%c0_205, %c99] : memref<4x512xf32, #tpu.memory_space<vmem>>, vector<4x256xf32>
      %c13 = arith.constant 13 : index
      %c0_206 = arith.constant 0 : index
      %c0_207 = arith.constant 0 : index
      %400 = vector.load %arg3[%c13, %c0_206, %c0_207] : memref<49x4x1xf32, #tpu.memory_space<vmem>>, vector<1x4x1xf32>
      %401 = vector.shape_cast %400 : vector<1x4x1xf32> to vector<4x1xf32>
      %402 = vector.broadcast %401 : vector<4x1xf32> to vector<4x256xf32>
      %403 = arith.mulf %402, %399 : vector<4x256xf32>
      %404 = arith.addf %398, %403 : vector<4x256xf32>
      %c0_208 = arith.constant 0 : index
      %c115 = arith.constant 115 : index
      %405 = vector.load %arg8[%c0_208, %c115] : memref<4x512xf32, #tpu.memory_space<vmem>>, vector<4x256xf32>
      %c20 = arith.constant 20 : index
      %c0_209 = arith.constant 0 : index
      %c0_210 = arith.constant 0 : index
      %406 = vector.load %arg3[%c20, %c0_209, %c0_210] : memref<49x4x1xf32, #tpu.memory_space<vmem>>, vector<1x4x1xf32>
      %407 = vector.shape_cast %406 : vector<1x4x1xf32> to vector<4x1xf32>
      %408 = vector.broadcast %407 : vector<4x1xf32> to vector<4x256xf32>
      %409 = arith.mulf %408, %405 : vector<4x256xf32>
      %410 = arith.addf %404, %409 : vector<4x256xf32>
      %c0_211 = arith.constant 0 : index
      %c131 = arith.constant 131 : index
      %411 = vector.load %arg8[%c0_211, %c131] : memref<4x512xf32, #tpu.memory_space<vmem>>, vector<4x256xf32>
      %c27 = arith.constant 27 : index
      %c0_212 = arith.constant 0 : index
      %c0_213 = arith.constant 0 : index
      %412 = vector.load %arg3[%c27, %c0_212, %c0_213] : memref<49x4x1xf32, #tpu.memory_space<vmem>>, vector<1x4x1xf32>
      %413 = vector.shape_cast %412 : vector<1x4x1xf32> to vector<4x1xf32>
      %414 = vector.broadcast %413 : vector<4x1xf32> to vector<4x256xf32>
      %415 = arith.mulf %414, %411 : vector<4x256xf32>
      %416 = arith.addf %410, %415 : vector<4x256xf32>
      %c0_214 = arith.constant 0 : index
      %c147 = arith.constant 147 : index
      %417 = vector.load %arg8[%c0_214, %c147] : memref<4x512xf32, #tpu.memory_space<vmem>>, vector<4x256xf32>
      %c34 = arith.constant 34 : index
      %c0_215 = arith.constant 0 : index
      %c0_216 = arith.constant 0 : index
      %418 = vector.load %arg3[%c34, %c0_215, %c0_216] : memref<49x4x1xf32, #tpu.memory_space<vmem>>, vector<1x4x1xf32>
      %419 = vector.shape_cast %418 : vector<1x4x1xf32> to vector<4x1xf32>
      %420 = vector.broadcast %419 : vector<4x1xf32> to vector<4x256xf32>
      %421 = arith.mulf %420, %417 : vector<4x256xf32>
      %422 = arith.addf %416, %421 : vector<4x256xf32>
      %c0_217 = arith.constant 0 : index
      %c163 = arith.constant 163 : index
      %423 = vector.load %arg8[%c0_217, %c163] : memref<4x512xf32, #tpu.memory_space<vmem>>, vector<4x256xf32>
      %c41 = arith.constant 41 : index
      %c0_218 = arith.constant 0 : index
      %c0_219 = arith.constant 0 : index
      %424 = vector.load %arg3[%c41, %c0_218, %c0_219] : memref<49x4x1xf32, #tpu.memory_space<vmem>>, vector<1x4x1xf32>
      %425 = vector.shape_cast %424 : vector<1x4x1xf32> to vector<4x1xf32>
      %426 = vector.broadcast %425 : vector<4x1xf32> to vector<4x256xf32>
      %427 = arith.mulf %426, %423 : vector<4x256xf32>
      %428 = arith.addf %422, %427 : vector<4x256xf32>
      %c0_220 = arith.constant 0 : index
      %c179 = arith.constant 179 : index
      %429 = vector.load %arg8[%c0_220, %c179] : memref<4x512xf32, #tpu.memory_space<vmem>>, vector<4x256xf32>
      %c48 = arith.constant 48 : index
      %c0_221 = arith.constant 0 : index
      %c0_222 = arith.constant 0 : index
      %430 = vector.load %arg3[%c48, %c0_221, %c0_222] : memref<49x4x1xf32, #tpu.memory_space<vmem>>, vector<1x4x1xf32>
      %431 = vector.shape_cast %430 : vector<1x4x1xf32> to vector<4x1xf32>
      %432 = vector.broadcast %431 : vector<4x1xf32> to vector<4x256xf32>
      %433 = arith.mulf %432, %429 : vector<4x256xf32>
      %434 = arith.addf %428, %433 : vector<4x256xf32>
      %c12_i32 = arith.constant 12 : i32
      %435 = vector.broadcast %c12_i32 : i32 to vector<1x256xi32>
      %436 = arith.cmpi sle, %96, %435 : vector<1x256xi32>
      %cst_223 = arith.constant 0.000000e+00 : f32
      %437 = vector.shape_cast %436 : vector<1x256xi1> to vector<1x256xi1>
      %438 = vector.broadcast %437 : vector<1x256xi1> to vector<4x256xi1>
      %439 = vector.broadcast %cst_223 : f32 to vector<4x256xf32>
      %440 = arith.select %438, %434, %439 : vector<4x256xi1>, vector<4x256xf32>
      %441 = arith.addf %391, %440 : vector<4x256xf32>
      %442 = vector.extract_strided_slice %441 {offsets = [0, 0], sizes = [2, 256], strides = [1, 1]} : vector<4x256xf32> to vector<2x256xf32>
      %443 = vector.extract_strided_slice %441 {offsets = [2, 0], sizes = [2, 256], strides = [1, 1]} : vector<4x256xf32> to vector<2x256xf32>
      %444 = arith.addf %442, %443 : vector<2x256xf32>
      %c0_224 = arith.constant 0 : index
      %445 = memref.load %arg4[%c0_224] : memref<1xf32, #tpu.memory_space<smem>>
      %446 = vector.broadcast %445 : f32 to vector<2x256xf32>
      %447 = arith.addf %444, %446 : vector<2x256xf32>
      %448 = arith.negf %447 : vector<2x256xf32>
      %449 = math.exp %448 : vector<2x256xf32>
      %cst_225 = arith.constant 1.000000e+00 : f32
      %450 = vector.broadcast %cst_225 : f32 to vector<2x256xf32>
      %451 = arith.addf %450, %449 : vector<2x256xf32>
      %452 = arith.divf %450, %451 : vector<2x256xf32>
      %c0_226 = arith.constant 0 : index
      %c0_227 = arith.constant 0 : index
      %c0_228 = arith.constant 0 : index
      %453 = vector.load %arg5[%c0_226, %c0_227, %c0_228] : memref<1x2x256xf32, #tpu.memory_space<vmem>>, vector<1x2x256xf32>
      %454 = vector.shape_cast %453 : vector<1x2x256xf32> to vector<2x256xf32>
      %455 = vector.shape_cast %452 : vector<2x256xf32> to vector<1x2x256xf32>
      tpu.vector_store %arg5[%c0_226, %c0_227, %c0_228], %455 {strides = array<i32>} : memref<1x2x256xf32, #tpu.memory_space<vmem>>, vector<1x2x256xf32>,
    } else {
    }
    return
  }
  func.func @transform_0(%arg0: i32, %arg1: i32) -> (i32, i32, i32) {
    %c0_i32 = arith.constant 0 : i32
    %c0_i32_0 = arith.constant 0 : i32
    return %arg0, %arg1, %c0_i32 : i32, i32, i32
  }
  func.func @transform_1(%arg0: i32, %arg1: i32) -> (i32, i32, i32) {
    %c0_i32 = arith.constant 0 : i32
    %c0_i32_0 = arith.constant 0 : i32
    %c0_i32_1 = arith.constant 0 : i32
    %c0_i32_2 = arith.constant 0 : i32
    return %c0_i32, %c0_i32_0, %c0_i32_1 : i32, i32, i32
  }
  func.func @transform_2(%arg0: i32, %arg1: i32) -> i32 {
    %c0_i32 = arith.constant 0 : i32
    %c0_i32_0 = arith.constant 0 : i32
    return %c0_i32 : i32
  }
  func.func @transform_3(%arg0: i32, %arg1: i32) -> (i32, i32, i32) {
    %c0_i32 = arith.constant 0 : i32
    %c0_i32_0 = arith.constant 0 : i32
    %c0_i32_1 = arith.constant 0 : i32
    return %arg0, %c0_i32, %c0_i32_0 : i32, i32, i32
  }
}

</mosaic_0001>

<llo_original>
// kernel: tpu_custom_call.1
$region0: #{tpu_custom_call.1}
  #allocation0 [shape = 'u32[]', space=smem, size = 0x4, offset = 0x4, fixed_abs, tag = 'smem constant byte address 0x4 - core index']
  #allocation1 [shape = 'u32[144,128]{1,0:T(1,128)}', space=vmem, size = 0x12000, scoped, tag = 'internal scratch']
  #allocation2 [shape = 'f32[2,8,256]{2,1,0:T(8,128)}', space=vmem, size = 0x4000, scoped, tag = 'scratch operand']
  #allocation3 [shape = 'f32[2,8,256]{2,1,0:T(8,128)}', space=vmem, size = 0x4000, scoped, tag = 'scratch operand']
  #allocation4 [shape = 'f32[4,512]{1,0:T(4,128)}', space=vmem, size = 0x2000, scoped, tag = 'scratch operand']
  #allocation5 [shape = 'f32[1]{0:T(128)S(6)}', space=smem, size = 0x200, scoped, tag = 'scoped memory for tpu_custom_call.1']
  %s0 = inlined_call_operand.vmem [shape: f32[2,4,256], index: 0, kind: input, shape index: {}]
  %s1 = inlined_call_operand.vmem [shape: f32[49,4,1], index: 1, kind: input, shape index: {}]
  %s2 = inlined_call_operand.<no memory space> [shape: f32[1], index: 2, kind: input, shape index: {}]
  %s3 = inlined_call_operand.hbm [shape: f32[1,2,256], index: 3, kind: output, shape index: {}]
  %s4 = sld [smem:[#allocation0]]
  $region30: #{tpu_custom_call.1} parent=0
    _
  %s6 = ssub.s32 1, %s4
  %s7 = scalar_select 0, %s6, %s4
  %8 = sst [smem:[#allocation5]] %s2
  $region1: #{tpu_custom_call.1} parent=0
    #allocation6 [shape = 'u8[2048]{0}', space=vmem, size = 0x800, scoped, tag = 'output window, operand 0, single buffered']
    #allocation7 [shape = 's32[1]{0}', space=sflag, size = 0x4, scoped, tag = 'scoped memory for tpu_custom_call.1']
    %9 = vsyncpa [#allocation7], 0
    // Predicated region
    $region2: #{tpu_custom_call.1} parent=1 // pred_check
      _
    $region3: #{tpu_custom_call.1} parent=1 // pred_check_branch
      %11 = sbr.rel (0) target = $region5
    $region4: #{tpu_custom_call.1} parent=1 // pred_region
      _
    $region5: #{tpu_custom_call.1} parent=1 // pred_fallthru
      _
    // Predicated region
    $region6: #{tpu_custom_call.1} parent=1 // pred_check
      _
    $region7: #{tpu_custom_call.1} parent=1 // pred_check_branch
      %13 = sbr.rel (0) target = $region9
    $region8: #{tpu_custom_call.1} parent=1 // pred_region
      _
    $region9: #{tpu_custom_call.1} parent=1 // pred_fallthru
      _
    // Predicated region
    $region10: #{tpu_custom_call.1} parent=1 // pred_check
      _
    $region11: #{tpu_custom_call.1} parent=1 // pred_check_branch
      %15 = sbr.rel (0) target = $region13
    $region12: #{tpu_custom_call.1} parent=1 // pred_region
      _
    $region13: #{tpu_custom_call.1} parent=1 // pred_fallthru
      _
    %p16 = scmp.eq.s32.totalorder 0, 0
    // Predicated region
    $region14: #{tpu_custom_call.1} parent=1 // pred_check
      %p17 = pneg %p16
    $region15: #{tpu_custom_call.1} parent=1 // pred_check_branch
      %19 = sbr.rel (%p17) target = $region17
    $region16: #{tpu_custom_call.1} parent=1 // pred_region
      %20 = vst [vmem:[#allocation2] sm:$0xff] -inf
      %21 = vst [vmem:[#allocation2 + $0x8] sm:$0xff] -inf
      %22 = vst [vmem:[#allocation2 + $0x10] sm:$0xff] -inf
      %23 = vst [vmem:[#allocation2 + $0x18] sm:$0xff] -inf
      %24 = vst [vmem:[#allocation3] sm:$0xff] 0.0
      %25 = vst [vmem:[#allocation3 + $0x8] sm:$0xff] 0.0
      %26 = vst [vmem:[#allocation3 + $0x10] sm:$0xff] 0.0
      %27 = vst [vmem:[#allocation3 + $0x18] sm:$0xff] 0.0
      %28 = vst [vmem:[#allocation4] sm:$0xf] 0.0
      %29 = vst [vmem:[#allocation4 + $0xc] sm:$0xf] 0.0
    $region17: #{tpu_custom_call.1} parent=1 // pred_fallthru
      _
    %v30 = vld [vmem:[#allocation2] sm:$0xff]
    %v31 = vld [vmem:[#allocation2 + $0x8] sm:$0xff]
    %v32 = vld [vmem:[#allocation3] sm:$0xff]
    %v33 = vld [vmem:[#allocation3 + $0x8] sm:$0xff]
    %v34 = vld [vmem:[%s0] sm:$0xff]
    %v36 = vcombine.high %v34, %v34
    %vm38 = vcmask 1043456
    %v39 = vsel %vm38, %v34, -inf
    %v40 = vrot.slane %v39, 4
    %v41 = vmax.f32 %v39, %v40
    %v42 = vrot.slane %v41, 2
    %v43 = vmax.f32 %v41, %v42
    %v44 = vrot.slane %v43, 1
    %v45 = vmax.f32 %v43, %v44
    %v46 = vsel %vm38, %v36, -inf
    %v47 = vrot.slane %v46, 4
    %v48 = vmax.f32 %v46, %v47
    %v49 = vrot.slane %v48, 2
    %v50 = vmax.f32 %v48, %v49
    %v51 = vrot.slane %v50, 1
    %v52 = vmax.f32 %v50, %v51
    %v53 = vmax.f32 %v30, %v45
    %v54 = vmax.f32 %v31, %v52
    %v55 = vsel %vm38, %v34, 0.0
    %v56 = vrot.slane %v55, 4
    %v57 = vadd.f32 %v55, %v56
    %v58 = vrot.slane %v57, 2
    %v59 = vadd.f32 %v57, %v58
    %v60 = vrot.slane %v59, 1
    %v61 = vadd.f32 %v59, %v60
    %v62 = vsel %vm38, %v36, 0.0
    %v63 = vrot.slane %v62, 4
    %v64 = vadd.f32 %v62, %v63
    %v65 = vrot.slane %v64, 2
    %v66 = vadd.f32 %v64, %v65
    %v67 = vrot.slane %v66, 1
    %v68 = vadd.f32 %v66, %v67
    %v69 = vlaneseq
    %v70 = vshrl.u32 %v69, 7
    %vm71 = vcmp.eq.s32.totalorder %v70, 0
    %v72 = vadd.f32 %v32, %v61
    %v73 = vadd.f32 %v33, %v68
    %v74 = vsel %vm71, 1, 0
    %vm75 = vcmp.eq.s32.totalorder %v74, 1
    %v76 = vsel %vm75, %v72, %v32
    %v77 = vsel %vm75, %v73, %v33
    %78 = vst [vmem:[#allocation2] sm:$0xff] %v53
    %79 = vst [vmem:[#allocation2 + $0x8] sm:$0xff] %v54
    %80 = vst [vmem:[#allocation3] sm:$0xff] %v76
    %81 = vst [vmem:[#allocation3 + $0x8] sm:$0xff] %v77
    %s82 = scalar_lea.vmem [#allocation2], 16
    %v83 = vld [vmem:[%s82] sm:$0xff]
    %v84 = vld [vmem:[%s82 + $0x8] sm:$0xff]
    %s85 = scalar_lea.vmem [#allocation3], 16
    %v86 = vld [vmem:[%s85] sm:$0xff]
    %v87 = vld [vmem:[%s85 + $0x8] sm:$0xff]
    %s88 = scalar_lea.vmem %s0, 8
    %v89 = vld [vmem:[%s88] sm:$0xff]
    %v91 = vcombine.high %v89, %v89
    %v93 = vsel %vm38, %v89, -inf
    %v94 = vrot.slane %v93, 4
    %v95 = vmax.f32 %v93, %v94
    %v96 = vrot.slane %v95, 2
    %v97 = vmax.f32 %v95, %v96
    %v98 = vrot.slane %v97, 1
    %v99 = vmax.f32 %v97, %v98
    %v100 = vsel %vm38, %v91, -inf
    %v101 = vrot.slane %v100, 4
    %v102 = vmax.f32 %v100, %v101
    %v103 = vrot.slane %v102, 2
    %v104 = vmax.f32 %v102, %v103
    %v105 = vrot.slane %v104, 1
    %v106 = vmax.f32 %v104, %v105
    %v107 = vmax.f32 %v83, %v99
    %v108 = vmax.f32 %v84, %v106
    %v109 = vsel %vm38, %v89, 0.0
    %v110 = vrot.slane %v109, 4
    %v111 = vadd.f32 %v109, %v110
    %v112 = vrot.slane %v111, 2
    %v113 = vadd.f32 %v111, %v112
    %v114 = vrot.slane %v113, 1
    %v115 = vadd.f32 %v113, %v114
    %v116 = vsel %vm38, %v91, 0.0
    %v117 = vrot.slane %v116, 4
    %v118 = vadd.f32 %v116, %v117
    %v119 = vrot.slane %v118, 2
    %v120 = vadd.f32 %v118, %v119
    %v121 = vrot.slane %v120, 1
    %v122 = vadd.f32 %v120, %v121
    %v123 = vadd.f32 %v86, %v115
    %v124 = vadd.f32 %v87, %v122
    %v125 = vsel %vm75, %v123, %v86
    %v126 = vsel %vm75, %v124, %v87
    %127 = vst [vmem:[%s82] sm:$0xff] %v107
    %128 = vst [vmem:[%s82 + $0x8] sm:$0xff] %v108
    %129 = vst [vmem:[%s85] sm:$0xff] %v125
    %130 = vst [vmem:[%s85 + $0x8] sm:$0xff] %v126
    // Predicated region
    $region18: #{tpu_custom_call.1} parent=1 // pred_check
      %p131 = pneg %p16
    $region19: #{tpu_custom_call.1} parent=1 // pred_check_branch
      %133 = sbr.rel (%p131) target = $region21
    $region20: #{tpu_custom_call.1} parent=1 // pred_region
      %v134 = vld [vmem:[#allocation2] sm:$0xff]
      %v135 = vld [vmem:[#allocation2 + $0x8] sm:$0xff]
      %v136 = vrot.slane %v134, 4
      %v137 = vmax.f32 %v134, %v136
      %v138 = vrot.slane %v137, 2
      %v139 = vmax.f32 %v137, %v138
      %v140 = vrot.slane %v139, 1
      %v141 = vmax.f32 %v139, %v140
      %v142 = vrot.slane %v135, 4
      %v143 = vmax.f32 %v135, %v142
      %v144 = vrot.slane %v143, 2
      %v145 = vmax.f32 %v143, %v144
      %v146 = vrot.slane %v145, 1
      %v147 = vmax.f32 %v145, %v146
      %v148 = vld [vmem:[%s82] sm:$0xff]
      %v149 = vld [vmem:[%s82 + $0x8] sm:$0xff]
      %v150 = vrot.slane %v148, 4
      %v151 = vmax.f32 %v148, %v150
      %v152 = vrot.slane %v151, 2
      %v153 = vmax.f32 %v151, %v152
      %v154 = vrot.slane %v153, 1
      %v155 = vmax.f32 %v153, %v154
      %v156 = vrot.slane %v149, 4
      %v157 = vmax.f32 %v149, %v156
      %v158 = vrot.slane %v157, 2
      %v159 = vmax.f32 %v157, %v158
      %v160 = vrot.slane %v159, 1
      %v161 = vmax.f32 %v159, %v160
      %v162 = vld [vmem:[#allocation3] sm:$0xff]
      %v163 = vld [vmem:[#allocation3 + $0x8] sm:$0xff]
      %v164 = vrot.slane %v162, 4
      %v165 = vadd.f32 %v162, %v164
      %v166 = vrot.slane %v165, 2
      %v167 = vadd.f32 %v165, %v166
      %v168 = vrot.slane %v167, 1
      %v169 = vadd.f32 %v167, %v168
      %v170 = vrot.slane %v163, 4
      %v171 = vadd.f32 %v163, %v170
      %v172 = vrot.slane %v171, 2
      %v173 = vadd.f32 %v171, %v172
      %v174 = vrot.slane %v173, 1
      %v175 = vadd.f32 %v173, %v174
      %v176 = vmul.f32 %v169, 0.25
      %v177 = vmul.f32 %v175, 0.25
      %v178 = vld [vmem:[%s85] sm:$0xff]
      %v179 = vld [vmem:[%s85 + $0x8] sm:$0xff]
      %v180 = vrot.slane %v178, 4
      %v181 = vadd.f32 %v178, %v180
      %v182 = vrot.slane %v181, 2
      %v183 = vadd.f32 %v181, %v182
      %v184 = vrot.slane %v183, 1
      %v185 = vadd.f32 %v183, %v184
      %v186 = vrot.slane %v179, 4
      %v187 = vadd.f32 %v179, %v186
      %v188 = vrot.slane %v187, 2
      %v189 = vadd.f32 %v187, %v188
      %v190 = vrot.slane %v189, 1
      %v191 = vadd.f32 %v189, %v190
      %v192 = vmul.f32 %v185, 0.25
      %v193 = vmul.f32 %v191, 0.25
      %vm194 = vcmask 1040384
      %v195 = vsel %vm194, %v141, %v155
      %v196 = vsel %vm194, %v147, %v161
      %vm197 = vcmask 1041408
      %v198 = vsel %vm197, %v195, %v176
      %v199 = vsel %vm197, %v196, %v177
      %vm200 = vcmask 1042432
      %v201 = vsel %vm200, %v198, %v192
      %v202 = vsel %vm200, %v199, %v193
      %v205 = vcombine.low %v201, %v202
      %207 = vst [vmem:[#allocation4 + $0x4] sm:$0xff] %v205
      %v208 = vlaneseq
      %v209 = vand.u32 %v208, 127
      %v210 = vadd.s32 %v209, 128
      %vm211 = vcmp.lt.s32.totalorder %v209, 0
      %v212 = vsub.s32 0, %v209
      %v213 = vsel %vm211, %v212, %v209
      %v214 = vshrl.u32 %v213, 4
      %v215 = vand.u32 %v213, 15
      %v216 = vsub.s32 0, %v215
      %v217 = vsel %vm211, %v216, %v215
      %vm218 = vcmp.lt.s32.totalorder %v210, 0
      %v219 = vsub.s32 0, %v210
      %v220 = vsel %vm218, %v219, %v210
      %v221 = vshrl.u32 %v220, 4
      %v222 = vand.u32 %v220, 15
      %v223 = vsub.s32 0, %v222
      %v224 = vsel %vm218, %v223, %v222
      %vm225 = vcmp.ne.s32.totalorder %v217, 0
      %vm226 = vcmp.ne.s32.totalorder %v224, 0
      %vm227 = vcmp.lt.s32.totalorder %v217, 0
      %vm228 = vcmp.lt.s32.totalorder %v224, 0
      %vm229 = vmand %vm227, %vm225
      %vm230 = vmand %vm228, %vm226
      %v231 = vadd.s32 %v217, 16
      %v232 = vadd.s32 %v224, 16
      %v233 = vsel %vm229, %v231, %v217
      %v234 = vsel %vm230, %v232, %v224
      %v235 = vld [vmem:[#allocation4] sm:$0xff]
      %v236 = vld [vmem:[#allocation4 + $0x8] sm:$0xf]
      %v237 = vld [vmem:[%s1] sm:$0xf]
      %239 = vset.pattern.permute.xlu0 0
      %240 = vperm.xlu0 %239, %v237
      %v241 = vpop.permute.xlu0 %240
      %v245 = vcombine.high %v235, %v235
      %246 = vrot.lane.b32.xlu0 %v235, 51
      %v247 = vpop.permute.xlu0 %246
      %248 = vrot.lane.b32.xlu0 %v245, 51
      %v249 = vpop.permute.xlu0 %248
      %250 = vrot.lane.b32.xlu0 %v236, 51
      %v251 = vpop.permute.xlu0 %250
      %vm252 = vcmask 416768
      %v253 = vsel %vm252, %v247, %v249
      %v254 = vsel %vm252, %v249, %v251
      %v257 = vmul.f32 %v241, %v253
      %v258 = vmul.f32 %v241, %v254
      %v259 = vadd.f32 %v257, 0.0
      %v260 = vadd.f32 %v258, 0.0
      %v261 = vld [vmem:[#allocation4] sm:$0xff]
      %v262 = vld [vmem:[#allocation4 + $0x8] sm:$0xf]
      %s263 = scalar_lea.vmem %s1, 28
      %v264 = vld [vmem:[%s263] sm:$0xf]
      %266 = vset.pattern.permute.xlu0 0
      %267 = vperm.xlu0 %266, %v264
      %v268 = vpop.permute.xlu0 %267
      %v272 = vcombine.high %v261, %v261
      %273 = vrot.lane.b32.xlu0 %v261, 35
      %v274 = vpop.permute.xlu0 %273
      %275 = vrot.lane.b32.xlu0 %v272, 35
      %v276 = vpop.permute.xlu0 %275
      %277 = vrot.lane.b32.xlu0 %v262, 35
      %v278 = vpop.permute.xlu0 %277
      %vm279 = vcmask 285696
      %v280 = vsel %vm279, %v274, %v276
      %v281 = vsel %vm279, %v276, %v278
      %v284 = vmul.f32 %v268, %v280
      %v285 = vmul.f32 %v268, %v281
      %v286 = vadd.f32 %v259, %v284
      %v287 = vadd.f32 %v260, %v285
      %v288 = vld [vmem:[#allocation4] sm:$0xff]
      %v289 = vld [vmem:[#allocation4 + $0x8] sm:$0xf]
      %s290 = scalar_lea.vmem %s1, 56
      %v291 = vld [vmem:[%s290] sm:$0xf]
      %293 = vset.pattern.permute.xlu0 0
      %294 = vperm.xlu0 %293, %v291
      %v295 = vpop.permute.xlu0 %294
      %v299 = vcombine.high %v288, %v288
      %300 = vrot.lane.b32.xlu0 %v288, 19
      %v301 = vpop.permute.xlu0 %300
      %302 = vrot.lane.b32.xlu0 %v299, 19
      %v303 = vpop.permute.xlu0 %302
      %304 = vrot.lane.b32.xlu0 %v289, 19
      %v305 = vpop.permute.xlu0 %304
      %vm306 = vcmask 154624
      %v307 = vsel %vm306, %v301, %v303
      %v308 = vsel %vm306, %v303, %v305
      %v311 = vmul.f32 %v295, %v307
      %v312 = vmul.f32 %v295, %v308
      %v313 = vadd.f32 %v286, %v311
      %v314 = vadd.f32 %v287, %v312
      %v315 = vld [vmem:[#allocation4] sm:$0xff]
      %v316 = vld [vmem:[#allocation4 + $0x8] sm:$0xf]
      %s317 = scalar_lea.vmem %s1, 84
      %v318 = vld [vmem:[%s317] sm:$0xf]
      %320 = vset.pattern.permute.xlu0 0
      %321 = vperm.xlu0 %320, %v318
      %v322 = vpop.permute.xlu0 %321
      %v326 = vcombine.high %v315, %v315
      %327 = vrot.lane.b32.xlu0 %v315, 3
      %v328 = vpop.permute.xlu0 %327
      %329 = vrot.lane.b32.xlu0 %v326, 3
      %v330 = vpop.permute.xlu0 %329
      %331 = vrot.lane.b32.xlu0 %v316, 3
      %v332 = vpop.permute.xlu0 %331
      %vm333 = vcmask 23552
      %v334 = vsel %vm333, %v328, %v330
      %v335 = vsel %vm333, %v330, %v332
      %v338 = vmul.f32 %v322, %v334
      %v339 = vmul.f32 %v322, %v335
      %v340 = vadd.f32 %v313, %v338
      %v341 = vadd.f32 %v314, %v339
      %v342 = vld [vmem:[#allocation4 + $0x4] sm:$0xff]
      %v343 = vld [vmem:[#allocation4 + $0xc] sm:$0xf]
      %s344 = scalar_lea.vmem %s1, 112
      %v345 = vld [vmem:[%s344] sm:$0xf]
      %347 = vset.pattern.permute.xlu0 0
      %348 = vperm.xlu0 %347, %v345
      %v349 = vpop.permute.xlu0 %348
      %v353 = vcombine.high %v342, %v342
      %354 = vrot.lane.b32.xlu0 %v342, 115
      %v355 = vpop.permute.xlu0 %354
      %356 = vrot.lane.b32.xlu0 %v353, 115
      %v357 = vpop.permute.xlu0 %356
      %358 = vrot.lane.b32.xlu0 %v343, 115
      %v359 = vpop.permute.xlu0 %358
      %vm360 = vcmask 941056
      %v361 = vsel %vm360, %v355, %v357
      %v362 = vsel %vm360, %v357, %v359
      %v365 = vmul.f32 %v349, %v361
      %v366 = vmul.f32 %v349, %v362
      %v367 = vadd.f32 %v340, %v365
      %v368 = vadd.f32 %v341, %v366
      %v369 = vld [vmem:[#allocation4 + $0x4] sm:$0xff]
      %v370 = vld [vmem:[#allocation4 + $0xc] sm:$0xf]
      %s371 = scalar_lea.vmem %s1, 140
      %v372 = vld [vmem:[%s371] sm:$0xf]
      %374 = vset.pattern.permute.xlu0 0
      %375 = vperm.xlu0 %374, %v372
      %v376 = vpop.permute.xlu0 %375
      %v380 = vcombine.high %v369, %v369
      %381 = vrot.lane.b32.xlu0 %v369, 99
      %v382 = vpop.permute.xlu0 %381
      %383 = vrot.lane.b32.xlu0 %v380, 99
      %v384 = vpop.permute.xlu0 %383
      %385 = vrot.lane.b32.xlu0 %v370, 99
      %v386 = vpop.permute.xlu0 %385
      %vm387 = vcmask 809984
      %v388 = vsel %vm387, %v382, %v384
      %v389 = vsel %vm387, %v384, %v386
      %v392 = vmul.f32 %v376, %v388
      %v393 = vmul.f32 %v376, %v389
      %v394 = vadd.f32 %v367, %v392
      %v395 = vadd.f32 %v368, %v393
      %v396 = vld [vmem:[#allocation4 + $0x4] sm:$0xff]
      %v397 = vld [vmem:[#allocation4 + $0xc] sm:$0xf]
      %s398 = scalar_lea.vmem %s1, 168
      %v399 = vld [vmem:[%s398] sm:$0xf]
      %401 = vset.pattern.permute.xlu0 0
      %402 = vperm.xlu0 %401, %v399
      %v403 = vpop.permute.xlu0 %402
      %v407 = vcombine.high %v396, %v396
      %408 = vrot.lane.b32.xlu0 %v396, 83
      %v409 = vpop.permute.xlu0 %408
      %410 = vrot.lane.b32.xlu0 %v407, 83
      %v411 = vpop.permute.xlu0 %410
      %412 = vrot.lane.b32.xlu0 %v397, 83
      %v413 = vpop.permute.xlu0 %412
      %vm414 = vcmask 678912
      %v415 = vsel %vm414, %v409, %v411
      %v416 = vsel %vm414, %v411, %v413
      %v419 = vmul.f32 %v403, %v415
      %v420 = vmul.f32 %v403, %v416
      %v421 = vadd.f32 %v394, %v419
      %v422 = vadd.f32 %v395, %v420
      %vm423 = vcmp.ge.s32.totalorder %v233, 3
      %vm424 = vcmp.ge.s32.totalorder %v234, 3
      %v425 = vsel %vm423, 1, 0
      %v426 = vsel %vm424, 1, 0
      %vm427 = vcmp.eq.s32.totalorder %v425, 1
      %vm428 = vcmp.eq.s32.totalorder %v426, 1
      %v429 = vsel %vm427, %v421, 0.0
      %v430 = vsel %vm428, %v422, 0.0
      %v431 = vadd.f32 %v429, 0.0
      %v432 = vadd.f32 %v430, 0.0
      %v433 = vld [vmem:[#allocation4] sm:$0xff]
      %v434 = vld [vmem:[#allocation4 + $0x8] sm:$0xf]
      %s435 = scalar_lea.vmem %s1, 4
      %v436 = vld [vmem:[%s435] sm:$0xf]
      %438 = vset.pattern.permute.xlu0 0
      %439 = vperm.xlu0 %438, %v436
      %v440 = vpop.permute.xlu0 %439
      %v444 = vcombine.high %v433, %v433
      %445 = vrot.lane.b32.xlu0 %v433, 50
      %v446 = vpop.permute.xlu0 %445
      %447 = vrot.lane.b32.xlu0 %v444, 50
      %v448 = vpop.permute.xlu0 %447
      %449 = vrot.lane.b32.xlu0 %v434, 50
      %v450 = vpop.permute.xlu0 %449
      %vm451 = vcmask 408576
      %v452 = vsel %vm451, %v446, %v448
      %v453 = vsel %vm451, %v448, %v450
      %v456 = vmul.f32 %v440, %v452
      %v457 = vmul.f32 %v440, %v453
      %v458 = vadd.f32 %v456, 0.0
      %v459 = vadd.f32 %v457, 0.0
      %v460 = vld [vmem:[#allocation4] sm:$0xff]
      %v461 = vld [vmem:[#allocation4 + $0x8] sm:$0xf]
      %s462 = scalar_lea.vmem %s1, 32
      %v463 = vld [vmem:[%s462] sm:$0xf]
      %465 = vset.pattern.permute.xlu0 0
      %466 = vperm.xlu0 %465, %v463
      %v467 = vpop.permute.xlu0 %466
      %v471 = vcombine.high %v460, %v460
      %472 = vrot.lane.b32.xlu0 %v460, 34
      %v473 = vpop.permute.xlu0 %472
      %474 = vrot.lane.b32.xlu0 %v471, 34
      %v475 = vpop.permute.xlu0 %474
      %476 = vrot.lane.b32.xlu0 %v461, 34
      %v477 = vpop.permute.xlu0 %476
      %vm478 = vcmask 277504
      %v479 = vsel %vm478, %v473, %v475
      %v480 = vsel %vm478, %v475, %v477
      %v483 = vmul.f32 %v467, %v479
      %v484 = vmul.f32 %v467, %v480
      %v485 = vadd.f32 %v458, %v483
      %v486 = vadd.f32 %v459, %v484
      %v487 = vld [vmem:[#allocation4] sm:$0xff]
      %v488 = vld [vmem:[#allocation4 + $0x8] sm:$0xf]
      %s489 = scalar_lea.vmem %s1, 60
      %v490 = vld [vmem:[%s489] sm:$0xf]
      %492 = vset.pattern.permute.xlu0 0
      %493 = vperm.xlu0 %492, %v490
      %v494 = vpop.permute.xlu0 %493
      %v498 = vcombine.high %v487, %v487
      %499 = vrot.lane.b32.xlu0 %v487, 18
      %v500 = vpop.permute.xlu0 %499
      %501 = vrot.lane.b32.xlu0 %v498, 18
      %v502 = vpop.permute.xlu0 %501
      %503 = vrot.lane.b32.xlu0 %v488, 18
      %v504 = vpop.permute.xlu0 %503
      %vm505 = vcmask 146432
      %v506 = vsel %vm505, %v500, %v502
      %v507 = vsel %vm505, %v502, %v504
      %v510 = vmul.f32 %v494, %v506
      %v511 = vmul.f32 %v494, %v507
      %v512 = vadd.f32 %v485, %v510
      %v513 = vadd.f32 %v486, %v511
      %v514 = vld [vmem:[#allocation4] sm:$0xff]
      %v515 = vld [vmem:[#allocation4 + $0x8] sm:$0xf]
      %s516 = scalar_lea.vmem %s1, 88
      %v517 = vld [vmem:[%s516] sm:$0xf]
      %519 = vset.pattern.permute.xlu0 0
      %520 = vperm.xlu0 %519, %v517
      %v521 = vpop.permute.xlu0 %520
      %v525 = vcombine.high %v514, %v514
      %526 = vrot.lane.b32.xlu0 %v514, 2
      %v527 = vpop.permute.xlu0 %526
      %528 = vrot.lane.b32.xlu0 %v525, 2
      %v529 = vpop.permute.xlu0 %528
      %530 = vrot.lane.b32.xlu0 %v515, 2
      %v531 = vpop.permute.xlu0 %530
      %vm532 = vcmask 15360
      %v533 = vsel %vm532, %v527, %v529
      %v534 = vsel %vm532, %v529, %v531
      %v537 = vmul.f32 %v521, %v533
      %v538 = vmul.f32 %v521, %v534
      %v539 = vadd.f32 %v512, %v537
      %v540 = vadd.f32 %v513, %v538
      %v541 = vld [vmem:[#allocation4 + $0x4] sm:$0xff]
      %v542 = vld [vmem:[#allocation4 + $0xc] sm:$0xf]
      %s543 = scalar_lea.vmem %s1, 116
      %v544 = vld [vmem:[%s543] sm:$0xf]
      %546 = vset.pattern.permute.xlu0 0
      %547 = vperm.xlu0 %546, %v544
      %v548 = vpop.permute.xlu0 %547
      %v552 = vcombine.high %v541, %v541
      %553 = vrot.lane.b32.xlu0 %v541, 114
      %v554 = vpop.permute.xlu0 %553
      %555 = vrot.lane.b32.xlu0 %v552, 114
      %v556 = vpop.permute.xlu0 %555
      %557 = vrot.lane.b32.xlu0 %v542, 114
      %v558 = vpop.permute.xlu0 %557
      %vm559 = vcmask 932864
      %v560 = vsel %vm559, %v554, %v556
      %v561 = vsel %vm559, %v556, %v558
      %v564 = vmul.f32 %v548, %v560
      %v565 = vmul.f32 %v548, %v561
      %v566 = vadd.f32 %v539, %v564
      %v567 = vadd.f32 %v540, %v565
      %v568 = vld [vmem:[#allocation4 + $0x4] sm:$0xff]
      %v569 = vld [vmem:[#allocation4 + $0xc] sm:$0xf]
      %s570 = scalar_lea.vmem %s1, 144
      %v571 = vld [vmem:[%s570] sm:$0xf]
      %573 = vset.pattern.permute.xlu0 0
      %574 = vperm.xlu0 %573, %v571
      %v575 = vpop.permute.xlu0 %574
      %v579 = vcombine.high %v568, %v568
      %580 = vrot.lane.b32.xlu0 %v568, 98
      %v581 = vpop.permute.xlu0 %580
      %582 = vrot.lane.b32.xlu0 %v579, 98
      %v583 = vpop.permute.xlu0 %582
      %584 = vrot.lane.b32.xlu0 %v569, 98
      %v585 = vpop.permute.xlu0 %584
      %vm586 = vcmask 801792
      %v587 = vsel %vm586, %v581, %v583
      %v588 = vsel %vm586, %v583, %v585
      %v591 = vmul.f32 %v575, %v587
      %v592 = vmul.f32 %v575, %v588
      %v593 = vadd.f32 %v566, %v591
      %v594 = vadd.f32 %v567, %v592
      %v595 = vld [vmem:[#allocation4 + $0x4] sm:$0xff]
      %v596 = vld [vmem:[#allocation4 + $0xc] sm:$0xf]
      %s597 = scalar_lea.vmem %s1, 172
      %v598 = vld [vmem:[%s597] sm:$0xf]
      %600 = vset.pattern.permute.xlu0 0
      %601 = vperm.xlu0 %600, %v598
      %v602 = vpop.permute.xlu0 %601
      %v606 = vcombine.high %v595, %v595
      %607 = vrot.lane.b32.xlu0 %v595, 82
      %v608 = vpop.permute.xlu0 %607
      %609 = vrot.lane.b32.xlu0 %v606, 82
      %v610 = vpop.permute.xlu0 %609
      %611 = vrot.lane.b32.xlu0 %v596, 82
      %v612 = vpop.permute.xlu0 %611
      %vm613 = vcmask 670720
      %v614 = vsel %vm613, %v608, %v610
      %v615 = vsel %vm613, %v610, %v612
      %v618 = vmul.f32 %v602, %v614
      %v619 = vmul.f32 %v602, %v615
      %v620 = vadd.f32 %v593, %v618
      %v621 = vadd.f32 %v594, %v619
      %vm622 = vcmp.ge.s32.totalorder %v233, 2
      %vm623 = vcmp.ge.s32.totalorder %v234, 2
      %v624 = vsel %vm622, 1, 0
      %v625 = vsel %vm623, 1, 0
      %vm626 = vcmp.eq.s32.totalorder %v624, 1
      %vm627 = vcmp.eq.s32.totalorder %v625, 1
      %v628 = vsel %vm626, %v620, 0.0
      %v629 = vsel %vm627, %v621, 0.0
      %v630 = vadd.f32 %v431, %v628
      %v631 = vadd.f32 %v432, %v629
      %v632 = vld [vmem:[#allocation4] sm:$0xff]
      %v633 = vld [vmem:[#allocation4 + $0x8] sm:$0xf]
      %s634 = scalar_lea.vmem %s1, 8
      %v635 = vld [vmem:[%s634] sm:$0xf]
      %637 = vset.pattern.permute.xlu0 0
      %638 = vperm.xlu0 %637, %v635
      %v639 = vpop.permute.xlu0 %638
      %v643 = vcombine.high %v632, %v632
      %644 = vrot.lane.b32.xlu0 %v632, 49
      %v645 = vpop.permute.xlu0 %644
      %646 = vrot.lane.b32.xlu0 %v643, 49
      %v647 = vpop.permute.xlu0 %646
      %648 = vrot.lane.b32.xlu0 %v633, 49
      %v649 = vpop.permute.xlu0 %648
      %vm650 = vcmask 400384
      %v651 = vsel %vm650, %v645, %v647
      %v652 = vsel %vm650, %v647, %v649
      %v655 = vmul.f32 %v639, %v651
      %v656 = vmul.f32 %v639, %v652
      %v657 = vadd.f32 %v655, 0.0
      %v658 = vadd.f32 %v656, 0.0
      %v659 = vld [vmem:[#allocation4] sm:$0xff]
      %v660 = vld [vmem:[#allocation4 + $0x8] sm:$0xf]
      %s661 = scalar_lea.vmem %s1, 36
      %v662 = vld [vmem:[%s661] sm:$0xf]
      %664 = vset.pattern.permute.xlu0 0
      %665 = vperm.xlu0 %664, %v662
      %v666 = vpop.permute.xlu0 %665
      %v670 = vcombine.high %v659, %v659
      %671 = vrot.lane.b32.xlu0 %v659, 33
      %v672 = vpop.permute.xlu0 %671
      %673 = vrot.lane.b32.xlu0 %v670, 33
      %v674 = vpop.permute.xlu0 %673
      %675 = vrot.lane.b32.xlu0 %v660, 33
      %v676 = vpop.permute.xlu0 %675
      %vm677 = vcmask 269312
      %v678 = vsel %vm677, %v672, %v674
      %v679 = vsel %vm677, %v674, %v676
      %v682 = vmul.f32 %v666, %v678
      %v683 = vmul.f32 %v666, %v679
      %v684 = vadd.f32 %v657, %v682
      %v685 = vadd.f32 %v658, %v683
      %v686 = vld [vmem:[#allocation4] sm:$0xff]
      %v687 = vld [vmem:[#allocation4 + $0x8] sm:$0xf]
      %s688 = scalar_lea.vmem %s1, 64
      %v689 = vld [vmem:[%s688] sm:$0xf]
      %691 = vset.pattern.permute.xlu0 0
      %692 = vperm.xlu0 %691, %v689
      %v693 = vpop.permute.xlu0 %692
      %v697 = vcombine.high %v686, %v686
      %698 = vrot.lane.b32.xlu0 %v686, 17
      %v699 = vpop.permute.xlu0 %698
      %700 = vrot.lane.b32.xlu0 %v697, 17
      %v701 = vpop.permute.xlu0 %700
      %702 = vrot.lane.b32.xlu0 %v687, 17
      %v703 = vpop.permute.xlu0 %702
      %vm704 = vcmask 138240
      %v705 = vsel %vm704, %v699, %v701
      %v706 = vsel %vm704, %v701, %v703
      %v709 = vmul.f32 %v693, %v705
      %v710 = vmul.f32 %v693, %v706
      %v711 = vadd.f32 %v684, %v709
      %v712 = vadd.f32 %v685, %v710
      %v713 = vld [vmem:[#allocation4] sm:$0xff]
      %v714 = vld [vmem:[#allocation4 + $0x8] sm:$0xf]
      %s715 = scalar_lea.vmem %s1, 92
      %v716 = vld [vmem:[%s715] sm:$0xf]
      %718 = vset.pattern.permute.xlu0 0
      %719 = vperm.xlu0 %718, %v716
      %v720 = vpop.permute.xlu0 %719
      %v724 = vcombine.high %v713, %v713
      %725 = vrot.lane.b32.xlu0 %v713, 1
      %v726 = vpop.permute.xlu0 %725
      %727 = vrot.lane.b32.xlu0 %v724, 1
      %v728 = vpop.permute.xlu0 %727
      %729 = vrot.lane.b32.xlu0 %v714, 1
      %v730 = vpop.permute.xlu0 %729
      %vm731 = vcmask 7168
      %v732 = vsel %vm731, %v726, %v728
      %v733 = vsel %vm731, %v728, %v730
      %v736 = vmul.f32 %v720, %v732
      %v737 = vmul.f32 %v720, %v733
      %v738 = vadd.f32 %v711, %v736
      %v739 = vadd.f32 %v712, %v737
      %v740 = vld [vmem:[#allocation4 + $0x4] sm:$0xff]
      %v741 = vld [vmem:[#allocation4 + $0xc] sm:$0xf]
      %s742 = scalar_lea.vmem %s1, 120
      %v743 = vld [vmem:[%s742] sm:$0xf]
      %745 = vset.pattern.permute.xlu0 0
      %746 = vperm.xlu0 %745, %v743
      %v747 = vpop.permute.xlu0 %746
      %v751 = vcombine.high %v740, %v740
      %752 = vrot.lane.b32.xlu0 %v740, 113
      %v753 = vpop.permute.xlu0 %752
      %754 = vrot.lane.b32.xlu0 %v751, 113
      %v755 = vpop.permute.xlu0 %754
      %756 = vrot.lane.b32.xlu0 %v741, 113
      %v757 = vpop.permute.xlu0 %756
      %vm758 = vcmask 924672
      %v759 = vsel %vm758, %v753, %v755
      %v760 = vsel %vm758, %v755, %v757
      %v763 = vmul.f32 %v747, %v759
      %v764 = vmul.f32 %v747, %v760
      %v765 = vadd.f32 %v738, %v763
      %v766 = vadd.f32 %v739, %v764
      %v767 = vld [vmem:[#allocation4 + $0x4] sm:$0xff]
      %v768 = vld [vmem:[#allocation4 + $0xc] sm:$0xf]
      %s769 = scalar_lea.vmem %s1, 148
      %v770 = vld [vmem:[%s769] sm:$0xf]
      %772 = vset.pattern.permute.xlu0 0
      %773 = vperm.xlu0 %772, %v770
      %v774 = vpop.permute.xlu0 %773
      %v778 = vcombine.high %v767, %v767
      %779 = vrot.lane.b32.xlu0 %v767, 97
      %v780 = vpop.permute.xlu0 %779
      %781 = vrot.lane.b32.xlu0 %v778, 97
      %v782 = vpop.permute.xlu0 %781
      %783 = vrot.lane.b32.xlu0 %v768, 97
      %v784 = vpop.permute.xlu0 %783
      %vm785 = vcmask 793600
      %v786 = vsel %vm785, %v780, %v782
      %v787 = vsel %vm785, %v782, %v784
      %v790 = vmul.f32 %v774, %v786
      %v791 = vmul.f32 %v774, %v787
      %v792 = vadd.f32 %v765, %v790
      %v793 = vadd.f32 %v766, %v791
      %v794 = vld [vmem:[#allocation4 + $0x4] sm:$0xff]
      %v795 = vld [vmem:[#allocation4 + $0xc] sm:$0xf]
      %s796 = scalar_lea.vmem %s1, 176
      %v797 = vld [vmem:[%s796] sm:$0xf]
      %799 = vset.pattern.permute.xlu0 0
      %800 = vperm.xlu0 %799, %v797
      %v801 = vpop.permute.xlu0 %800
      %v805 = vcombine.high %v794, %v794
      %806 = vrot.lane.b32.xlu0 %v794, 81
      %v807 = vpop.permute.xlu0 %806
      %808 = vrot.lane.b32.xlu0 %v805, 81
      %v809 = vpop.permute.xlu0 %808
      %810 = vrot.lane.b32.xlu0 %v795, 81
      %v811 = vpop.permute.xlu0 %810
      %vm812 = vcmask 662528
      %v813 = vsel %vm812, %v807, %v809
      %v814 = vsel %vm812, %v809, %v811
      %v817 = vmul.f32 %v801, %v813
      %v818 = vmul.f32 %v801, %v814
      %v819 = vadd.f32 %v792, %v817
      %v820 = vadd.f32 %v793, %v818
      %vm821 = vcmp.ge.s32.totalorder %v233, 1
      %vm822 = vcmp.ge.s32.totalorder %v234, 1
      %v823 = vsel %vm821, 1, 0
      %v824 = vsel %vm822, 1, 0
      %vm825 = vcmp.eq.s32.totalorder %v823, 1
      %vm826 = vcmp.eq.s32.totalorder %v824, 1
      %v827 = vsel %vm825, %v819, 0.0
      %v828 = vsel %vm826, %v820, 0.0
      %v829 = vadd.f32 %v630, %v827
      %v830 = vadd.f32 %v631, %v828
      %v831 = vld [vmem:[#allocation4] sm:$0xff]
      %v832 = vld [vmem:[#allocation4 + $0x8] sm:$0xf]
      %s833 = scalar_lea.vmem %s1, 12
      %v834 = vld [vmem:[%s833] sm:$0xf]
      %836 = vset.pattern.permute.xlu0 0
      %837 = vperm.xlu0 %836, %v834
      %v838 = vpop.permute.xlu0 %837
      %v842 = vcombine.high %v831, %v831
      %843 = vrot.lane.b32.xlu0 %v831, 48
      %v844 = vpop.permute.xlu0 %843
      %845 = vrot.lane.b32.xlu0 %v842, 48
      %v846 = vpop.permute.xlu0 %845
      %847 = vrot.lane.b32.xlu0 %v832, 48
      %v848 = vpop.permute.xlu0 %847
      %vm849 = vcmask 392192
      %v850 = vsel %vm849, %v844, %v846
      %v851 = vsel %vm849, %v846, %v848
      %v854 = vmul.f32 %v838, %v850
      %v855 = vmul.f32 %v838, %v851
      %v856 = vadd.f32 %v854, 0.0
      %v857 = vadd.f32 %v855, 0.0
      %v858 = vld [vmem:[#allocation4] sm:$0xff]
      %v859 = vld [vmem:[#allocation4 + $0x8] sm:$0xf]
      %s860 = scalar_lea.vmem %s1, 40
      %v861 = vld [vmem:[%s860] sm:$0xf]
      %863 = vset.pattern.permute.xlu0 0
      %864 = vperm.xlu0 %863, %v861
      %v865 = vpop.permute.xlu0 %864
      %v869 = vcombine.high %v858, %v858
      %870 = vrot.lane.b32.xlu0 %v858, 32
      %v871 = vpop.permute.xlu0 %870
      %872 = vrot.lane.b32.xlu0 %v869, 32
      %v873 = vpop.permute.xlu0 %872
      %874 = vrot.lane.b32.xlu0 %v859, 32
      %v875 = vpop.permute.xlu0 %874
      %vm876 = vcmask 261120
      %v877 = vsel %vm876, %v871, %v873
      %v878 = vsel %vm876, %v873, %v875
      %v881 = vmul.f32 %v865, %v877
      %v882 = vmul.f32 %v865, %v878
      %v883 = vadd.f32 %v856, %v881
      %v884 = vadd.f32 %v857, %v882
      %v885 = vld [vmem:[#allocation4] sm:$0xff]
      %v886 = vld [vmem:[#allocation4 + $0x8] sm:$0xf]
      %s887 = scalar_lea.vmem %s1, 68
      %v888 = vld [vmem:[%s887] sm:$0xf]
      %890 = vset.pattern.permute.xlu0 0
      %891 = vperm.xlu0 %890, %v888
      %v892 = vpop.permute.xlu0 %891
      %v896 = vcombine.high %v885, %v885
      %897 = vrot.lane.b32.xlu0 %v885, 16
      %v898 = vpop.permute.xlu0 %897
      %899 = vrot.lane.b32.xlu0 %v896, 16
      %v900 = vpop.permute.xlu0 %899
      %901 = vrot.lane.b32.xlu0 %v886, 16
      %v902 = vpop.permute.xlu0 %901
      %vm903 = vcmask 130048
      %v904 = vsel %vm903, %v898, %v900
      %v905 = vsel %vm903, %v900, %v902
      %v908 = vmul.f32 %v892, %v904
      %v909 = vmul.f32 %v892, %v905
      %v910 = vadd.f32 %v883, %v908
      %v911 = vadd.f32 %v884, %v909
      %v912 = vld [vmem:[#allocation4 + $0x4] sm:$0xff]
      %s913 = scalar_lea.vmem %s1, 96
      %v914 = vld [vmem:[%s913] sm:$0xf]
      %916 = vset.pattern.permute.xlu0 0
      %917 = vperm.xlu0 %916, %v914
      %v918 = vpop.permute.xlu0 %917
      %v921 = vcombine.high %v912, %v912
      %v923 = vmul.f32 %v918, %v912
      %v924 = vmul.f32 %v918, %v921
      %v925 = vadd.f32 %v910, %v923
      %v926 = vadd.f32 %v911, %v924
      %v927 = vld [vmem:[#allocation4 + $0x4] sm:$0xff]
      %v928 = vld [vmem:[#allocation4 + $0xc] sm:$0xf]
      %s929 = scalar_lea.vmem %s1, 124
      %v930 = vld [vmem:[%s929] sm:$0xf]
      %932 = vset.pattern.permute.xlu0 0
      %933 = vperm.xlu0 %932, %v930
      %v934 = vpop.permute.xlu0 %933
      %v938 = vcombine.high %v927, %v927
      %939 = vrot.lane.b32.xlu0 %v927, 112
      %v940 = vpop.permute.xlu0 %939
      %941 = vrot.lane.b32.xlu0 %v938, 112
      %v942 = vpop.permute.xlu0 %941
      %943 = vrot.lane.b32.xlu0 %v928, 112
      %v944 = vpop.permute.xlu0 %943
      %vm945 = vcmask 916480
      %v946 = vsel %vm945, %v940, %v942
      %v947 = vsel %vm945, %v942, %v944
      %v950 = vmul.f32 %v934, %v946
      %v951 = vmul.f32 %v934, %v947
      %v952 = vadd.f32 %v925, %v950
      %v953 = vadd.f32 %v926, %v951
      %v954 = vld [vmem:[#allocation4 + $0x4] sm:$0xff]
      %v955 = vld [vmem:[#allocation4 + $0xc] sm:$0xf]
      %s956 = scalar_lea.vmem %s1, 152
      %v957 = vld [vmem:[%s956] sm:$0xf]
      %959 = vset.pattern.permute.xlu0 0
      %960 = vperm.xlu0 %959, %v957
      %v961 = vpop.permute.xlu0 %960
      %v965 = vcombine.high %v954, %v954
      %966 = vrot.lane.b32.xlu0 %v954, 96
      %v967 = vpop.permute.xlu0 %966
      %968 = vrot.lane.b32.xlu0 %v965, 96
      %v969 = vpop.permute.xlu0 %968
      %970 = vrot.lane.b32.xlu0 %v955, 96
      %v971 = vpop.permute.xlu0 %970
      %vm972 = vcmask 785408
      %v973 = vsel %vm972, %v967, %v969
      %v974 = vsel %vm972, %v969, %v971
      %v977 = vmul.f32 %v961, %v973
      %v978 = vmul.f32 %v961, %v974
      %v979 = vadd.f32 %v952, %v977
      %v980 = vadd.f32 %v953, %v978
      %v981 = vld [vmem:[#allocation4 + $0x4] sm:$0xff]
      %v982 = vld [vmem:[#allocation4 + $0xc] sm:$0xf]
      %s983 = scalar_lea.vmem %s1, 180
      %v984 = vld [vmem:[%s983] sm:$0xf]
      %986 = vset.pattern.permute.xlu0 0
      %987 = vperm.xlu0 %986, %v984
      %v988 = vpop.permute.xlu0 %987
      %v992 = vcombine.high %v981, %v981
      %993 = vrot.lane.b32.xlu0 %v981, 80
      %v994 = vpop.permute.xlu0 %993
      %995 = vrot.lane.b32.xlu0 %v992, 80
      %v996 = vpop.permute.xlu0 %995
      %997 = vrot.lane.b32.xlu0 %v982, 80
      %v998 = vpop.permute.xlu0 %997
      %vm999 = vcmask 654336
      %v1000 = vsel %vm999, %v994, %v996
      %v1001 = vsel %vm999, %v996, %v998
      %v1004 = vmul.f32 %v988, %v1000
      %v1005 = vmul.f32 %v988, %v1001
      %v1006 = vadd.f32 %v979, %v1004
      %v1007 = vadd.f32 %v980, %v1005
      %v1008 = vadd.f32 %v829, %v1006
      %v1009 = vadd.f32 %v830, %v1007
      %v1010 = vld [vmem:[#allocation4] sm:$0xff]
      %v1011 = vld [vmem:[#allocation4 + $0x8] sm:$0xf]
      %s1012 = scalar_lea.vmem %s1, 16
      %v1013 = vld [vmem:[%s1012] sm:$0xf]
      %1015 = vset.pattern.permute.xlu0 0
      %1016 = vperm.xlu0 %1015, %v1013
      %v1017 = vpop.permute.xlu0 %1016
      %v1021 = vcombine.high %v1010, %v1010
      %1022 = vrot.lane.b32.xlu0 %v1010, 47
      %v1023 = vpop.permute.xlu0 %1022
      %1024 = vrot.lane.b32.xlu0 %v1021, 47
      %v1025 = vpop.permute.xlu0 %1024
      %1026 = vrot.lane.b32.xlu0 %v1011, 47
      %v1027 = vpop.permute.xlu0 %1026
      %vm1028 = vcmask 384000
      %v1029 = vsel %vm1028, %v1023, %v1025
      %v1030 = vsel %vm1028, %v1025, %v1027
      %v1033 = vmul.f32 %v1017, %v1029
      %v1034 = vmul.f32 %v1017, %v1030
      %v1035 = vadd.f32 %v1033, 0.0
      %v1036 = vadd.f32 %v1034, 0.0
      %v1037 = vld [vmem:[#allocation4] sm:$0xff]
      %v1038 = vld [vmem:[#allocation4 + $0x8] sm:$0xf]
      %s1039 = scalar_lea.vmem %s1, 44
      %v1040 = vld [vmem:[%s1039] sm:$0xf]
      %1042 = vset.pattern.permute.xlu0 0
      %1043 = vperm.xlu0 %1042, %v1040
      %v1044 = vpop.permute.xlu0 %1043
      %v1048 = vcombine.high %v1037, %v1037
      %1049 = vrot.lane.b32.xlu0 %v1037, 31
      %v1050 = vpop.permute.xlu0 %1049
      %1051 = vrot.lane.b32.xlu0 %v1048, 31
      %v1052 = vpop.permute.xlu0 %1051
      %1053 = vrot.lane.b32.xlu0 %v1038, 31
      %v1054 = vpop.permute.xlu0 %1053
      %vm1055 = vcmask 252928
      %v1056 = vsel %vm1055, %v1050, %v1052
      %v1057 = vsel %vm1055, %v1052, %v1054
      %v1060 = vmul.f32 %v1044, %v1056
      %v1061 = vmul.f32 %v1044, %v1057
      %v1062 = vadd.f32 %v1035, %v1060
      %v1063 = vadd.f32 %v1036, %v1061
      %v1064 = vld [vmem:[#allocation4] sm:$0xff]
      %v1065 = vld [vmem:[#allocation4 + $0x8] sm:$0xf]
      %s1066 = scalar_lea.vmem %s1, 72
      %v1067 = vld [vmem:[%s1066] sm:$0xf]
      %1069 = vset.pattern.permute.xlu0 0
      %1070 = vperm.xlu0 %1069, %v1067
      %v1071 = vpop.permute.xlu0 %1070
      %v1075 = vcombine.high %v1064, %v1064
      %1076 = vrot.lane.b32.xlu0 %v1064, 15
      %v1077 = vpop.permute.xlu0 %1076
      %1078 = vrot.lane.b32.xlu0 %v1075, 15
      %v1079 = vpop.permute.xlu0 %1078
      %1080 = vrot.lane.b32.xlu0 %v1065, 15
      %v1081 = vpop.permute.xlu0 %1080
      %vm1082 = vcmask 121856
      %v1083 = vsel %vm1082, %v1077, %v1079
      %v1084 = vsel %vm1082, %v1079, %v1081
      %v1087 = vmul.f32 %v1071, %v1083
      %v1088 = vmul.f32 %v1071, %v1084
      %v1089 = vadd.f32 %v1062, %v1087
      %v1090 = vadd.f32 %v1063, %v1088
      %v1091 = vld [vmem:[#allocation4 + $0x4] sm:$0xff]
      %v1092 = vld [vmem:[#allocation4 + $0xc] sm:$0xf]
      %s1093 = scalar_lea.vmem %s1, 100
      %v1094 = vld [vmem:[%s1093] sm:$0xf]
      %1096 = vset.pattern.permute.xlu0 0
      %1097 = vperm.xlu0 %1096, %v1094
      %v1098 = vpop.permute.xlu0 %1097
      %v1102 = vcombine.high %v1091, %v1091
      %1103 = vrot.lane.b32.xlu0 %v1091, 127
      %v1104 = vpop.permute.xlu0 %1103
      %1105 = vrot.lane.b32.xlu0 %v1102, 127
      %v1106 = vpop.permute.xlu0 %1105
      %1107 = vrot.lane.b32.xlu0 %v1092, 127
      %v1108 = vpop.permute.xlu0 %1107
      %vm1109 = vcmask 1039360
      %v1110 = vsel %vm1109, %v1104, %v1106
      %v1111 = vsel %vm1109, %v1106, %v1108
      %v1114 = vmul.f32 %v1098, %v1110
      %v1115 = vmul.f32 %v1098, %v1111
      %v1116 = vadd.f32 %v1089, %v1114
      %v1117 = vadd.f32 %v1090, %v1115
      %v1118 = vld [vmem:[#allocation4 + $0x4] sm:$0xff]
      %v1119 = vld [vmem:[#allocation4 + $0xc] sm:$0xf]
      %s1120 = scalar_lea.vmem %s1, 128
      %v1121 = vld [vmem:[%s1120] sm:$0xf]
      %1123 = vset.pattern.permute.xlu0 0
      %1124 = vperm.xlu0 %1123, %v1121
      %v1125 = vpop.permute.xlu0 %1124
      %v1129 = vcombine.high %v1118, %v1118
      %1130 = vrot.lane.b32.xlu0 %v1118, 111
      %v1131 = vpop.permute.xlu0 %1130
      %1132 = vrot.lane.b32.xlu0 %v1129, 111
      %v1133 = vpop.permute.xlu0 %1132
      %1134 = vrot.lane.b32.xlu0 %v1119, 111
      %v1135 = vpop.permute.xlu0 %1134
      %vm1136 = vcmask 908288
      %v1137 = vsel %vm1136, %v1131, %v1133
      %v1138 = vsel %vm1136, %v1133, %v1135
      %v1141 = vmul.f32 %v1125, %v1137
      %v1142 = vmul.f32 %v1125, %v1138
      %v1143 = vadd.f32 %v1116, %v1141
      %v1144 = vadd.f32 %v1117, %v1142
      %v1145 = vld [vmem:[#allocation4 + $0x4] sm:$0xff]
      %v1146 = vld [vmem:[#allocation4 + $0xc] sm:$0xf]
      %s1147 = scalar_lea.vmem %s1, 156
      %v1148 = vld [vmem:[%s1147] sm:$0xf]
      %1150 = vset.pattern.permute.xlu0 0
      %1151 = vperm.xlu0 %1150, %v1148
      %v1152 = vpop.permute.xlu0 %1151
      %v1156 = vcombine.high %v1145, %v1145
      %1157 = vrot.lane.b32.xlu0 %v1145, 95
      %v1158 = vpop.permute.xlu0 %1157
      %1159 = vrot.lane.b32.xlu0 %v1156, 95
      %v1160 = vpop.permute.xlu0 %1159
      %1161 = vrot.lane.b32.xlu0 %v1146, 95
      %v1162 = vpop.permute.xlu0 %1161
      %vm1163 = vcmask 777216
      %v1164 = vsel %vm1163, %v1158, %v1160
      %v1165 = vsel %vm1163, %v1160, %v1162
      %v1168 = vmul.f32 %v1152, %v1164
      %v1169 = vmul.f32 %v1152, %v1165
      %v1170 = vadd.f32 %v1143, %v1168
      %v1171 = vadd.f32 %v1144, %v1169
      %v1172 = vld [vmem:[#allocation4 + $0x4] sm:$0xff]
      %v1173 = vld [vmem:[#allocation4 + $0xc] sm:$0xf]
      %s1174 = scalar_lea.vmem %s1, 184
      %v1175 = vld [vmem:[%s1174] sm:$0xf]
      %1177 = vset.pattern.permute.xlu0 0
      %1178 = vperm.xlu0 %1177, %v1175
      %v1179 = vpop.permute.xlu0 %1178
      %v1183 = vcombine.high %v1172, %v1172
      %1184 = vrot.lane.b32.xlu0 %v1172, 79
      %v1185 = vpop.permute.xlu0 %1184
      %1186 = vrot.lane.b32.xlu0 %v1183, 79
      %v1187 = vpop.permute.xlu0 %1186
      %1188 = vrot.lane.b32.xlu0 %v1173, 79
      %v1189 = vpop.permute.xlu0 %1188
      %vm1190 = vcmask 646144
      %v1191 = vsel %vm1190, %v1185, %v1187
      %v1192 = vsel %vm1190, %v1187, %v1189
      %v1195 = vmul.f32 %v1179, %v1191
      %v1196 = vmul.f32 %v1179, %v1192
      %v1197 = vadd.f32 %v1170, %v1195
      %v1198 = vadd.f32 %v1171, %v1196
      %vm1199 = vcmp.le.s32.totalorder %v233, 14
      %vm1200 = vcmp.le.s32.totalorder %v234, 14
      %v1201 = vsel %vm1199, 1, 0
      %v1202 = vsel %vm1200, 1, 0
      %vm1203 = vcmp.eq.s32.totalorder %v1201, 1
      %vm1204 = vcmp.eq.s32.totalorder %v1202, 1
      %v1205 = vsel %vm1203, %v1197, 0.0
      %v1206 = vsel %vm1204, %v1198, 0.0
      %v1207 = vadd.f32 %v1008, %v1205
      %v1208 = vadd.f32 %v1009, %v1206
      %v1209 = vld [vmem:[#allocation4] sm:$0xff]
      %v1210 = vld [vmem:[#allocation4 + $0x8] sm:$0xf]
      %s1211 = scalar_lea.vmem %s1, 20
      %v1212 = vld [vmem:[%s1211] sm:$0xf]
      %1214 = vset.pattern.permute.xlu0 0
      %1215 = vperm.xlu0 %1214, %v1212
      %v1216 = vpop.permute.xlu0 %1215
      %v1220 = vcombine.high %v1209, %v1209
      %1221 = vrot.lane.b32.xlu0 %v1209, 46
      %v1222 = vpop.permute.xlu0 %1221
      %1223 = vrot.lane.b32.xlu0 %v1220, 46
      %v1224 = vpop.permute.xlu0 %1223
      %1225 = vrot.lane.b32.xlu0 %v1210, 46
      %v1226 = vpop.permute.xlu0 %1225
      %vm1227 = vcmask 375808
      %v1228 = vsel %vm1227, %v1222, %v1224
      %v1229 = vsel %vm1227, %v1224, %v1226
      %v1232 = vmul.f32 %v1216, %v1228
      %v1233 = vmul.f32 %v1216, %v1229
      %v1234 = vadd.f32 %v1232, 0.0
      %v1235 = vadd.f32 %v1233, 0.0
      %v1236 = vld [vmem:[#allocation4] sm:$0xff]
      %v1237 = vld [vmem:[#allocation4 + $0x8] sm:$0xf]
      %s1238 = scalar_lea.vmem %s1, 48
      %v1239 = vld [vmem:[%s1238] sm:$0xf]
      %1241 = vset.pattern.permute.xlu0 0
      %1242 = vperm.xlu0 %1241, %v1239
      %v1243 = vpop.permute.xlu0 %1242
      %v1247 = vcombine.high %v1236, %v1236
      %1248 = vrot.lane.b32.xlu0 %v1236, 30
      %v1249 = vpop.permute.xlu0 %1248
      %1250 = vrot.lane.b32.xlu0 %v1247, 30
      %v1251 = vpop.permute.xlu0 %1250
      %1252 = vrot.lane.b32.xlu0 %v1237, 30
      %v1253 = vpop.permute.xlu0 %1252
      %vm1254 = vcmask 244736
      %v1255 = vsel %vm1254, %v1249, %v1251
      %v1256 = vsel %vm1254, %v1251, %v1253
      %v1259 = vmul.f32 %v1243, %v1255
      %v1260 = vmul.f32 %v1243, %v1256
      %v1261 = vadd.f32 %v1234, %v1259
      %v1262 = vadd.f32 %v1235, %v1260
      %v1263 = vld [vmem:[#allocation4] sm:$0xff]
      %v1264 = vld [vmem:[#allocation4 + $0x8] sm:$0xf]
      %s1265 = scalar_lea.vmem %s1, 76
      %v1266 = vld [vmem:[%s1265] sm:$0xf]
      %1268 = vset.pattern.permute.xlu0 0
      %1269 = vperm.xlu0 %1268, %v1266
      %v1270 = vpop.permute.xlu0 %1269
      %v1274 = vcombine.high %v1263, %v1263
      %1275 = vrot.lane.b32.xlu0 %v1263, 14
      %v1276 = vpop.permute.xlu0 %1275
      %1277 = vrot.lane.b32.xlu0 %v1274, 14
      %v1278 = vpop.permute.xlu0 %1277
      %1279 = vrot.lane.b32.xlu0 %v1264, 14
      %v1280 = vpop.permute.xlu0 %1279
      %vm1281 = vcmask 113664
      %v1282 = vsel %vm1281, %v1276, %v1278
      %v1283 = vsel %vm1281, %v1278, %v1280
      %v1286 = vmul.f32 %v1270, %v1282
      %v1287 = vmul.f32 %v1270, %v1283
      %v1288 = vadd.f32 %v1261, %v1286
      %v1289 = vadd.f32 %v1262, %v1287
      %v1290 = vld [vmem:[#allocation4 + $0x4] sm:$0xff]
      %v1291 = vld [vmem:[#allocation4 + $0xc] sm:$0xf]
      %s1292 = scalar_lea.vmem %s1, 104
      %v1293 = vld [vmem:[%s1292] sm:$0xf]
      %1295 = vset.pattern.permute.xlu0 0
      %1296 = vperm.xlu0 %1295, %v1293
      %v1297 = vpop.permute.xlu0 %1296
      %v1301 = vcombine.high %v1290, %v1290
      %1302 = vrot.lane.b32.xlu0 %v1290, 126
      %v1303 = vpop.permute.xlu0 %1302
      %1304 = vrot.lane.b32.xlu0 %v1301, 126
      %v1305 = vpop.permute.xlu0 %1304
      %1306 = vrot.lane.b32.xlu0 %v1291, 126
      %v1307 = vpop.permute.xlu0 %1306
      %vm1308 = vcmask 1031168
      %v1309 = vsel %vm1308, %v1303, %v1305
      %v1310 = vsel %vm1308, %v1305, %v1307
      %v1313 = vmul.f32 %v1297, %v1309
      %v1314 = vmul.f32 %v1297, %v1310
      %v1315 = vadd.f32 %v1288, %v1313
      %v1316 = vadd.f32 %v1289, %v1314
      %v1317 = vld [vmem:[#allocation4 + $0x4] sm:$0xff]
      %v1318 = vld [vmem:[#allocation4 + $0xc] sm:$0xf]
      %s1319 = scalar_lea.vmem %s1, 132
      %v1320 = vld [vmem:[%s1319] sm:$0xf]
      %1322 = vset.pattern.permute.xlu0 0
      %1323 = vperm.xlu0 %1322, %v1320
      %v1324 = vpop.permute.xlu0 %1323
      %v1328 = vcombine.high %v1317, %v1317
      %1329 = vrot.lane.b32.xlu0 %v1317, 110
      %v1330 = vpop.permute.xlu0 %1329
      %1331 = vrot.lane.b32.xlu0 %v1328, 110
      %v1332 = vpop.permute.xlu0 %1331
      %1333 = vrot.lane.b32.xlu0 %v1318, 110
      %v1334 = vpop.permute.xlu0 %1333
      %vm1335 = vcmask 900096
      %v1336 = vsel %vm1335, %v1330, %v1332
      %v1337 = vsel %vm1335, %v1332, %v1334
      %v1340 = vmul.f32 %v1324, %v1336
      %v1341 = vmul.f32 %v1324, %v1337
      %v1342 = vadd.f32 %v1315, %v1340
      %v1343 = vadd.f32 %v1316, %v1341
      %v1344 = vld [vmem:[#allocation4 + $0x4] sm:$0xff]
      %v1345 = vld [vmem:[#allocation4 + $0xc] sm:$0xf]
      %s1346 = scalar_lea.vmem %s1, 160
      %v1347 = vld [vmem:[%s1346] sm:$0xf]
      %1349 = vset.pattern.permute.xlu0 0
      %1350 = vperm.xlu0 %1349, %v1347
      %v1351 = vpop.permute.xlu0 %1350
      %v1355 = vcombine.high %v1344, %v1344
      %1356 = vrot.lane.b32.xlu0 %v1344, 94
      %v1357 = vpop.permute.xlu0 %1356
      %1358 = vrot.lane.b32.xlu0 %v1355, 94
      %v1359 = vpop.permute.xlu0 %1358
      %1360 = vrot.lane.b32.xlu0 %v1345, 94
      %v1361 = vpop.permute.xlu0 %1360
      %vm1362 = vcmask 769024
      %v1363 = vsel %vm1362, %v1357, %v1359
      %v1364 = vsel %vm1362, %v1359, %v1361
      %v1367 = vmul.f32 %v1351, %v1363
      %v1368 = vmul.f32 %v1351, %v1364
      %v1369 = vadd.f32 %v1342, %v1367
      %v1370 = vadd.f32 %v1343, %v1368
      %v1371 = vld [vmem:[#allocation4 + $0x4] sm:$0xff]
      %v1372 = vld [vmem:[#allocation4 + $0xc] sm:$0xf]
      %s1373 = scalar_lea.vmem %s1, 188
      %v1374 = vld [vmem:[%s1373] sm:$0xf]
      %1376 = vset.pattern.permute.xlu0 0
      %1377 = vperm.xlu0 %1376, %v1374
      %v1378 = vpop.permute.xlu0 %1377
      %v1382 = vcombine.high %v1371, %v1371
      %1383 = vrot.lane.b32.xlu0 %v1371, 78
      %v1384 = vpop.permute.xlu0 %1383
      %1385 = vrot.lane.b32.xlu0 %v1382, 78
      %v1386 = vpop.permute.xlu0 %1385
      %1387 = vrot.lane.b32.xlu0 %v1372, 78
      %v1388 = vpop.permute.xlu0 %1387
      %vm1389 = vcmask 637952
      %v1390 = vsel %vm1389, %v1384, %v1386
      %v1391 = vsel %vm1389, %v1386, %v1388
      %v1394 = vmul.f32 %v1378, %v1390
      %v1395 = vmul.f32 %v1378, %v1391
      %v1396 = vadd.f32 %v1369, %v1394
      %v1397 = vadd.f32 %v1370, %v1395
      %vm1398 = vcmp.le.s32.totalorder %v233, 13
      %vm1399 = vcmp.le.s32.totalorder %v234, 13
      %v1400 = vsel %vm1398, 1, 0
      %v1401 = vsel %vm1399, 1, 0
      %vm1402 = vcmp.eq.s32.totalorder %v1400, 1
      %vm1403 = vcmp.eq.s32.totalorder %v1401, 1
      %v1404 = vsel %vm1402, %v1396, 0.0
      %v1405 = vsel %vm1403, %v1397, 0.0
      %v1406 = vadd.f32 %v1207, %v1404
      %v1407 = vadd.f32 %v1208, %v1405
      %v1408 = vld [vmem:[#allocation4] sm:$0xff]
      %v1409 = vld [vmem:[#allocation4 + $0x8] sm:$0xf]
      %s1410 = scalar_lea.vmem %s1, 24
      %v1411 = vld [vmem:[%s1410] sm:$0xf]
      %1413 = vset.pattern.permute.xlu0 0
      %1414 = vperm.xlu0 %1413, %v1411
      %v1415 = vpop.permute.xlu0 %1414
      %v1419 = vcombine.high %v1408, %v1408
      %1420 = vrot.lane.b32.xlu0 %v1408, 45
      %v1421 = vpop.permute.xlu0 %1420
      %1422 = vrot.lane.b32.xlu0 %v1419, 45
      %v1423 = vpop.permute.xlu0 %1422
      %1424 = vrot.lane.b32.xlu0 %v1409, 45
      %v1425 = vpop.permute.xlu0 %1424
      %vm1426 = vcmask 367616
      %v1427 = vsel %vm1426, %v1421, %v1423
      %v1428 = vsel %vm1426, %v1423, %v1425
      %v1431 = vmul.f32 %v1415, %v1427
      %v1432 = vmul.f32 %v1415, %v1428
      %v1433 = vadd.f32 %v1431, 0.0
      %v1434 = vadd.f32 %v1432, 0.0
      %v1435 = vld [vmem:[#allocation4] sm:$0xff]
      %v1436 = vld [vmem:[#allocation4 + $0x8] sm:$0xf]
      %s1437 = scalar_lea.vmem %s1, 52
      %v1438 = vld [vmem:[%s1437] sm:$0xf]
      %1440 = vset.pattern.permute.xlu0 0
      %1441 = vperm.xlu0 %1440, %v1438
      %v1442 = vpop.permute.xlu0 %1441
      %v1446 = vcombine.high %v1435, %v1435
      %1447 = vrot.lane.b32.xlu0 %v1435, 29
      %v1448 = vpop.permute.xlu0 %1447
      %1449 = vrot.lane.b32.xlu0 %v1446, 29
      %v1450 = vpop.permute.xlu0 %1449
      %1451 = vrot.lane.b32.xlu0 %v1436, 29
      %v1452 = vpop.permute.xlu0 %1451
      %vm1453 = vcmask 236544
      %v1454 = vsel %vm1453, %v1448, %v1450
      %v1455 = vsel %vm1453, %v1450, %v1452
      %v1458 = vmul.f32 %v1442, %v1454
      %v1459 = vmul.f32 %v1442, %v1455
      %v1460 = vadd.f32 %v1433, %v1458
      %v1461 = vadd.f32 %v1434, %v1459
      %v1462 = vld [vmem:[#allocation4] sm:$0xff]
      %v1463 = vld [vmem:[#allocation4 + $0x8] sm:$0xf]
      %s1464 = scalar_lea.vmem %s1, 80
      %v1465 = vld [vmem:[%s1464] sm:$0xf]
      %1467 = vset.pattern.permute.xlu0 0
      %1468 = vperm.xlu0 %1467, %v1465
      %v1469 = vpop.permute.xlu0 %1468
      %v1473 = vcombine.high %v1462, %v1462
      %1474 = vrot.lane.b32.xlu0 %v1462, 13
      %v1475 = vpop.permute.xlu0 %1474
      %1476 = vrot.lane.b32.xlu0 %v1473, 13
      %v1477 = vpop.permute.xlu0 %1476
      %1478 = vrot.lane.b32.xlu0 %v1463, 13
      %v1479 = vpop.permute.xlu0 %1478
      %vm1480 = vcmask 105472
      %v1481 = vsel %vm1480, %v1475, %v1477
      %v1482 = vsel %vm1480, %v1477, %v1479
      %v1485 = vmul.f32 %v1469, %v1481
      %v1486 = vmul.f32 %v1469, %v1482
      %v1487 = vadd.f32 %v1460, %v1485
      %v1488 = vadd.f32 %v1461, %v1486
      %v1489 = vld [vmem:[#allocation4 + $0x4] sm:$0xff]
      %v1490 = vld [vmem:[#allocation4 + $0xc] sm:$0xf]
      %s1491 = scalar_lea.vmem %s1, 108
      %v1492 = vld [vmem:[%s1491] sm:$0xf]
      %1494 = vset.pattern.permute.xlu0 0
      %1495 = vperm.xlu0 %1494, %v1492
      %v1496 = vpop.permute.xlu0 %1495
      %v1500 = vcombine.high %v1489, %v1489
      %1501 = vrot.lane.b32.xlu0 %v1489, 125
      %v1502 = vpop.permute.xlu0 %1501
      %1503 = vrot.lane.b32.xlu0 %v1500, 125
      %v1504 = vpop.permute.xlu0 %1503
      %1505 = vrot.lane.b32.xlu0 %v1490, 125
      %v1506 = vpop.permute.xlu0 %1505
      %vm1507 = vcmask 1022976
      %v1508 = vsel %vm1507, %v1502, %v1504
      %v1509 = vsel %vm1507, %v1504, %v1506
      %v1512 = vmul.f32 %v1496, %v1508
      %v1513 = vmul.f32 %v1496, %v1509
      %v1514 = vadd.f32 %v1487, %v1512
      %v1515 = vadd.f32 %v1488, %v1513
      %v1516 = vld [vmem:[#allocation4 + $0x4] sm:$0xff]
      %v1517 = vld [vmem:[#allocation4 + $0xc] sm:$0xf]
      %s1518 = scalar_lea.vmem %s1, 136
      %v1519 = vld [vmem:[%s1518] sm:$0xf]
      %1521 = vset.pattern.permute.xlu0 0
      %1522 = vperm.xlu0 %1521, %v1519
      %v1523 = vpop.permute.xlu0 %1522
      %v1527 = vcombine.high %v1516, %v1516
      %1528 = vrot.lane.b32.xlu0 %v1516, 109
      %v1529 = vpop.permute.xlu0 %1528
      %1530 = vrot.lane.b32.xlu0 %v1527, 109
      %v1531 = vpop.permute.xlu0 %1530
      %1532 = vrot.lane.b32.xlu0 %v1517, 109
      %v1533 = vpop.permute.xlu0 %1532
      %vm1534 = vcmask 891904
      %v1535 = vsel %vm1534, %v1529, %v1531
      %v1536 = vsel %vm1534, %v1531, %v1533
      %v1539 = vmul.f32 %v1523, %v1535
      %v1540 = vmul.f32 %v1523, %v1536
      %v1541 = vadd.f32 %v1514, %v1539
      %v1542 = vadd.f32 %v1515, %v1540
      %v1543 = vld [vmem:[#allocation4 + $0x4] sm:$0xff]
      %v1544 = vld [vmem:[#allocation4 + $0xc] sm:$0xf]
      %s1545 = scalar_lea.vmem %s1, 164
      %v1546 = vld [vmem:[%s1545] sm:$0xf]
      %1548 = vset.pattern.permute.xlu0 0
      %1549 = vperm.xlu0 %1548, %v1546
      %v1550 = vpop.permute.xlu0 %1549
      %v1554 = vcombine.high %v1543, %v1543
      %1555 = vrot.lane.b32.xlu0 %v1543, 93
      %v1556 = vpop.permute.xlu0 %1555
      %1557 = vrot.lane.b32.xlu0 %v1554, 93
      %v1558 = vpop.permute.xlu0 %1557
      %1559 = vrot.lane.b32.xlu0 %v1544, 93
      %v1560 = vpop.permute.xlu0 %1559
      %vm1561 = vcmask 760832
      %v1562 = vsel %vm1561, %v1556, %v1558
      %v1563 = vsel %vm1561, %v1558, %v1560
      %v1566 = vmul.f32 %v1550, %v1562
      %v1567 = vmul.f32 %v1550, %v1563
      %v1568 = vadd.f32 %v1541, %v1566
      %v1569 = vadd.f32 %v1542, %v1567
      %v1570 = vld [vmem:[#allocation4 + $0x4] sm:$0xff]
      %v1571 = vld [vmem:[#allocation4 + $0xc] sm:$0xf]
      %s1572 = scalar_lea.vmem %s1, 192
      %v1573 = vld [vmem:[%s1572] sm:$0xf]
      %1575 = vset.pattern.permute.xlu0 0
      %1576 = vperm.xlu0 %1575, %v1573
      %v1577 = vpop.permute.xlu0 %1576
      %v1581 = vcombine.high %v1570, %v1570
      %1582 = vrot.lane.b32.xlu0 %v1570, 77
      %v1583 = vpop.permute.xlu0 %1582
      %1584 = vrot.lane.b32.xlu0 %v1581, 77
      %v1585 = vpop.permute.xlu0 %1584
      %1586 = vrot.lane.b32.xlu0 %v1571, 77
      %v1587 = vpop.permute.xlu0 %1586
      %vm1588 = vcmask 629760
      %v1589 = vsel %vm1588, %v1583, %v1585
      %v1590 = vsel %vm1588, %v1585, %v1587
      %v1593 = vmul.f32 %v1577, %v1589
      %v1594 = vmul.f32 %v1577, %v1590
      %v1595 = vadd.f32 %v1568, %v1593
      %v1596 = vadd.f32 %v1569, %v1594
      %vm1597 = vcmp.le.s32.totalorder %v233, 12
      %vm1598 = vcmp.le.s32.totalorder %v234, 12
      %v1599 = vsel %vm1597, 1, 0
      %v1600 = vsel %vm1598, 1, 0
      %vm1601 = vcmp.eq.s32.totalorder %v1599, 1
      %vm1602 = vcmp.eq.s32.totalorder %v1600, 1
      %v1603 = vsel %vm1601, %v1595, 0.0
      %v1604 = vsel %vm1602, %v1596, 0.0
      %v1605 = vadd.f32 %v1406, %v1603
      %v1606 = vadd.f32 %v1407, %v1604
      %v1609 = vrot.slane %v1605, 2
      %v1610 = vrot.slane %v1606, 2
      %v1613 = vadd.f32 %v1605, %v1609
      %v1614 = vadd.f32 %v1606, %v1610
      %s1615 = sld [smem:[#allocation5]]
      %v1616 = vstv %s1615
      %v1617 = vadd.f32 %v1613, %v1616
      %v1618 = vadd.f32 %v1614, %v1616
      %v1619 = vxor.u32 %v1617, 2147483648
      %v1620 = vxor.u32 %v1618, 2147483648
      %v1621 = vmul.f32 %v1619, 1.442695
      %v1622 = vpow.pop %v1621
      %v1623 = vmul.f32 %v1620, 1.442695
      %v1624 = vpow.pop %v1623
      %v1625 = vadd.f32 %v1622, 1.0
      %v1626 = vadd.f32 %v1624, 1.0
      %v1627 = vrcp.pop %v1625
      %v1628 = vmul.f32 1.0, %v1627
      %v1629 = vrcp.pop %v1626
      %v1630 = vmul.f32 1.0, %v1629
      %v1633 = vcombine.low %v1628, %v1630
      %v1635 = vunpack.c.l.s4 1983009808
      %v1636 = vunpack.c.0.s8 %v1635
      %v1637 = vlaneseq
      %v1638 = vshrl.u32 %v1637, 7
      %v1639 = vsub.s32 %v1636, %v1638
      %v1640 = vrot.slane %v1633, %v1639
      %1642 = vst [vmem:[#allocation6] sm:$0xf] %v1640
    $region21: #{tpu_custom_call.1} parent=1 // pred_fallthru
      _
    // Predicated region
    $region22: #{tpu_custom_call.1} parent=1 // pred_check
      _
    $region23: #{tpu_custom_call.1} parent=1 // pred_check_branch
      %1644 = sbr.rel (0) target = $region25
    $region24: #{tpu_custom_call.1} parent=1 // pred_region
      %s1646 = ssub.s32 64, 64
      %1647 = vsyncadd [#allocation7], %s1646
      %s1649 = sshll.u32 [#allocation6], 4
      %s1650 = int_to_ptr.vmem [resolvable:$true] %s1649
      %1652 = dma.vmem_to_hbm [thread:$0]  %s1650, 64, %s3, [#allocation7]
    $region25: #{tpu_custom_call.1} parent=1 // pred_fallthru
      _
    // Predicated region
    $region26: #{tpu_custom_call.1} parent=1 // pred_check
      _
    $region27: #{tpu_custom_call.1} parent=1 // pred_check_branch
      %1654 = sbr.rel (0) target = $region29
    $region28: #{tpu_custom_call.1} parent=1 // pred_region
      %1655 = dma.done [#allocation7], 64
    $region29: #{tpu_custom_call.1} parent=1 // pred_fallthru
      _
    %1656 = vsyncpa [#allocation7], 1

</llo_original>
